<compile_context>
chip_gen: v7x
topology: tpu7x:2x2x1
jax: 0.10.0
libtpu: 0.0.40
codegen_flags: <defaults>
</compile_context>

<pallas_src>
import jax
import jax.numpy as jnp
import numpy as np
from jax.experimental import pallas as pl
from jax.experimental.pallas import tpu as pltpu

LANE = 128
BN_EPS = 1e-5


def _round_up(x, m):
    return (x + m - 1) // m * m


# ---------------------------------------------------------------------------
# Pass 1: masked conv (im2col, single MXU matmul) + per-image sum / sum-sq
# ---------------------------------------------------------------------------
def conv_stats_kernel(x_ref, w_ref, conv_ref, stats_ref, patch_ref):
    # x_ref:     (1, Hp, Wp, Cin)    padded NHWC input (one image)
    # w_ref:     (K*K*Cin, Cp)       masked weights, Cout zero-padded to Cp=128
    # conv_ref:  (1, H, W, Cp)       conv output (lane-dense)
    # stats_ref: (1, 2, Cp)          row 0 = sum, row 1 = sum of squares
    # patch_ref: (H*W, K*K*Cin)      im2col scratch (VMEM)
    _, Hp, Wp, Cin = x_ref.shape
    Cp = w_ref.shape[1]
    _, H, W, _ = conv_ref.shape
    K = Hp - H + 1

    x = x_ref[...]

    # Build the im2col patch matrix once; all K*K taps fused into one matmul.
    for ky in range(K):
        for kx in range(K):
            c0 = (ky * K + kx) * Cin
            patch_ref[:, c0:c0 + Cin] = (
                x[0, ky:ky + H, kx:kx + W, :].reshape(H * W, Cin))

    acc = jnp.dot(patch_ref[...], w_ref[...],
                  preferred_element_type=jnp.float32)          # (H*W, Cp)

    conv_ref[...] = acc.reshape(1, H, W, Cp)

    # Per-image partial statistics for BatchNorm (reduced across N outside).
    s = jnp.sum(acc, axis=0, keepdims=True)                    # (1, Cp)
    sq = jnp.sum(acc * acc, axis=0, keepdims=True)             # (1, Cp)
    stats_ref[...] = jnp.concatenate([s, sq], axis=0).reshape(1, 2, Cp)


# ---------------------------------------------------------------------------
# Pass 2: BatchNorm normalization folded into a single FMA
# ---------------------------------------------------------------------------
def bn_apply_kernel(conv_ref, a_ref, b_ref, o_ref):
    # a_ref / b_ref: (1, Cp) per-channel row vectors; broadcast over N,H,W.
    o_ref[...] = conv_ref[...] * a_ref[...] + b_ref[...]


# ---------------------------------------------------------------------------
# Wrapper / parameter glue
# ---------------------------------------------------------------------------
def make_mask(masktype, kernel_size, in_channels):
    """1 where the input pixel is visible (mask A: center hidden, B: visible)."""
    assert masktype in "AB"
    assert kernel_size % 2 == 1
    twod_size = kernel_size * kernel_size
    flat = np.zeros(twod_size, dtype=np.float32)
    flat[: twod_size // 2] = 1.0
    if masktype == "B":
        flat[twod_size // 2] = 1.0
    twod = flat.reshape(kernel_size, kernel_size)
    return jnp.broadcast_to(jnp.asarray(twod),
                            (1, in_channels, kernel_size, kernel_size))


@jax.jit
def masked_conv_layer(x_nchw, weight, bias, gamma, beta, mask):
    """Forward of MaskedConvLayer. x_nchw: (N, Cin, H, W) f32 -> (N, Cout, H, W)."""
    del bias  # conv bias cancels exactly under training-mode BatchNorm
    Cout, Cin, K, _ = weight.shape
    pad = K // 2
    Cp = _round_up(max(Cout, LANE), LANE)   # lane-dense output channel dim

    # Mask + reshape weights to (K*K*Cin, Cp), zero-padding the Cout axis.
    w_masked = weight * mask                                   # (Cout,Cin,K,K)
    w_mat = jnp.transpose(w_masked, (2, 3, 1, 0)).reshape(K * K * Cin, Cout)
    w_mat = jnp.pad(w_mat, ((0, 0), (0, Cp - Cout))).astype(jnp.float32)

    # NCHW -> padded NHWC (transpose + pad fuse into one copy under jit).
    x = jnp.transpose(x_nchw, (0, 2, 3, 1)).astype(jnp.float32)
    x_pad = jnp.pad(x, ((0, 0), (pad, pad), (pad, pad), (0, 0)))
    N, Hp, Wp, _ = x_pad.shape
    H, W = Hp - 2 * pad, Wp - 2 * pad

    cparams = pltpu.CompilerParams(
        dimension_semantics=("parallel",),
        vmem_limit_bytes=32 * 1024 * 1024)

    # ---- pass 1: conv + per-image sum / sum-of-squares ---------------------
    conv, stats = pl.pallas_call(
        conv_stats_kernel,
        grid=(N,),
        out_shape=(jax.ShapeDtypeStruct((N, H, W, Cp), jnp.float32),
                   jax.ShapeDtypeStruct((N, 2, Cp), jnp.float32)),
        in_specs=[
            pl.BlockSpec((1, Hp, Wp, Cin), lambda i: (i, 0, 0, 0)),
            pl.BlockSpec((K * K * Cin, Cp), lambda i: (0, 0)),
        ],
        out_specs=(
            pl.BlockSpec((1, H, W, Cp), lambda i: (i, 0, 0, 0)),
            pl.BlockSpec((1, 2, Cp), lambda i: (i, 0, 0)),
        ),
        scratch_shapes=[pltpu.VMEM((H * W, K * K * Cin), jnp.float32)],
        compiler_params=cparams,
    )(x_pad, w_mat)

    # ---- tiny per-channel glue: fold BN into one FMA (a, b) ----------------
    n = N * H * W
    mean = jnp.sum(stats[:, 0, :], axis=0) / n                 # (Cp,)
    var = jnp.sum(stats[:, 1, :], axis=0) / n - mean * mean    # biased var
    var = jnp.maximum(var, 0.0)                                # guard cancellation
    inv_std = jax.lax.rsqrt(var + BN_EPS)
    gamma_p = jnp.pad(gamma.astype(jnp.float32), (0, Cp - Cout))
    beta_p = jnp.pad(beta.astype(jnp.float32), (0, Cp - Cout))
    a = (gamma_p * inv_std).reshape(1, Cp)
    b = (beta_p - mean * gamma_p * inv_std).reshape(1, Cp)

    # ---- pass 2: y = conv * a + b ------------------------------------------
    y = pl.pallas_call(
        bn_apply_kernel,
        grid=(N,),
        out_shape=jax.ShapeDtypeStruct((N, H, W, Cp), jnp.float32),
        in_specs=[
            pl.BlockSpec((1, H, W, Cp), lambda i: (i, 0, 0, 0)),
            pl.BlockSpec((1, Cp), lambda i: (0, 0)),
            pl.BlockSpec((1, Cp), lambda i: (0, 0)),
        ],
        out_specs=pl.BlockSpec((1, H, W, Cp), lambda i: (i, 0, 0, 0)),
        compiler_params=cparams,
    )(conv, a, b)

    # Slice off the channel padding and return NCHW.
    return jnp.transpose(y[:, :, :, :Cout], (0, 3, 1, 2))


# ---------------------------------------------------------------------------
# Pure-JAX reference for verification
# ---------------------------------------------------------------------------
def reference_forward(x_nchw, weight, bias, gamma, beta, mask):
    w_masked = weight * mask
    w_hwio = jnp.transpose(w_masked, (2, 3, 1, 0))
    x = jnp.transpose(x_nchw, (0, 2, 3, 1)).astype(jnp.float32)
    conv = jax.lax.conv_general_dilated(
        x, w_hwio.astype(jnp.float32), window_strides=(1, 1), padding="SAME",
        dimension_numbers=("NHWC", "HWIO", "NHWC"))
    conv = conv + bias.reshape(1, 1, 1, -1)
    mean = conv.mean(axis=(0, 1, 2), keepdims=True)
    var = conv.var(axis=(0, 1, 2), keepdims=True)  # biased, like PyTorch BN fwd
    y = (conv - mean) * jax.lax.rsqrt(var + 1e-5)
    y = y * gamma.reshape(1, 1, 1, -1) + beta.reshape(1, 1, 1, -1)
    return jnp.transpose(y, (0, 3, 1, 2))


if __name__ == "__main__":
    # Small deterministic setup: N=2, Cin=4, H=W=16, Cout=8, K=3, mask type 'B'.
    N, Cin, H, W = 2, 4, 16, 16
    Cout, K = 8, 3
    masktype = "B"

    key = jax.random.PRNGKey(0)
    kx_, kw_, kb_ = jax.random.split(key, 3)

    x = jax.random.normal(kx_, (N, Cin, H, W), dtype=jnp.float32)

    # Deterministic parameter init (Conv2d-like uniform fan-in scaling).
    fan_in = Cin * K * K
    bound = 1.0 / np.sqrt(fan_in)
    weight = jax.random.uniform(kw_, (Cout, Cin, K, K), jnp.float32,
                                minval=-bound, maxval=bound)
    bias = jax.random.uniform(kb_, (Cout,), jnp.float32,
                              minval=-bound, maxval=bound)
    gamma = jnp.ones((Cout,), jnp.float32)   # BatchNorm2d default init
    beta = jnp.zeros((Cout,), jnp.float32)

    mask = make_mask(masktype, K, Cin)

    out = jax.block_until_ready(
        masked_conv_layer(x, weight, bias, gamma, beta, mask))
    ref = jax.block_until_ready(
        reference_forward(x, weight, bias, gamma, beta, mask))

    assert out.shape == (N, Cout, H, W), out.shape
    np.testing.assert_allclose(np.asarray(out), np.asarray(ref),
                               rtol=1e-4, atol=1e-4)
    print("KERNEL_OK")
</pallas_src>

<mosaic_0001>
module attributes {stable_mosaic.version = 11 : i64} {
  func.func @conv_stats_kernel(%arg0: i32, %arg1: memref<1x18x18x4xf32, #tpu.memory_space<vmem>>, %arg2: memref<36x128xf32, #tpu.memory_space<vmem>>, %arg3: memref<1x16x16x128xf32, #tpu.memory_space<vmem>>, %arg4: memref<1x2x128xf32, #tpu.memory_space<vmem>>, %arg5: memref<256x36xf32, #tpu.memory_space<vmem>>) attributes {dimension_semantics = [#tpu.dimension_semantics<parallel>], iteration_bounds = array<i64: 2>, scalar_prefetch = 0 : i64, scratch_operands = 1 : i64, tpu.core_type = #tpu.core_type<tc>, window_params = [{transform_indices = @transform_0, window_bounds = array<i64: 1, 18, 18, 4>}, {pipeline_mode = #tpu.pipeline_mode<synchronous>, transform_indices = @transform_1, window_bounds = array<i64: 36, 128>}, {transform_indices = @transform_2, window_bounds = array<i64: 1, 16, 16, 128>}, {transform_indices = @transform_3, window_bounds = array<i64: 1, 2, 128>}]} {
    %c0 = arith.constant 0 : index
    %c0_0 = arith.constant 0 : index
    %c0_1 = arith.constant 0 : index
    %c0_2 = arith.constant 0 : index
    %0 = vector.load %arg1[%c0, %c0_0, %c0_1, %c0_2] : memref<1x18x18x4xf32, #tpu.memory_space<vmem>>, vector<1x18x18x4xf32>
    %1 = vector.extract_strided_slice %0 {offsets = [0, 0, 0, 0], sizes = [1, 16, 16, 4], strides = [1, 1, 1, 1]} : vector<1x18x18x4xf32> to vector<1x16x16x4xf32>
    %2 = vector.shape_cast %1 : vector<1x16x16x4xf32> to vector<16x16x4xf32>
    %3 = vector.shape_cast %2 : vector<16x16x4xf32> to vector<256x4xf32>
    %c0_3 = arith.constant 0 : index
    %c0_4 = arith.constant 0 : index
    %4 = vector.load %arg5[%c0_3, %c0_4] : memref<256x36xf32, #tpu.memory_space<vmem>>, vector<256x4xf32>
    tpu.vector_store %arg5[%c0_3, %c0_4], %3 {strides = array<i32>} : memref<256x36xf32, #tpu.memory_space<vmem>>, vector<256x4xf32>,
    %5 = vector.extract_strided_slice %0 {offsets = [0, 0, 1, 0], sizes = [1, 16, 16, 4], strides = [1, 1, 1, 1]} : vector<1x18x18x4xf32> to vector<1x16x16x4xf32>
    %6 = vector.shape_cast %5 : vector<1x16x16x4xf32> to vector<16x16x4xf32>
    %7 = vector.shape_cast %6 : vector<16x16x4xf32> to vector<256x4xf32>
    %c0_5 = arith.constant 0 : index
    %c4 = arith.constant 4 : index
    %8 = vector.load %arg5[%c0_5, %c4] : memref<256x36xf32, #tpu.memory_space<vmem>>, vector<256x4xf32>
    tpu.vector_store %arg5[%c0_5, %c4], %7 {strides = array<i32>} : memref<256x36xf32, #tpu.memory_space<vmem>>, vector<256x4xf32>,
    %9 = vector.extract_strided_slice %0 {offsets = [0, 0, 2, 0], sizes = [1, 16, 16, 4], strides = [1, 1, 1, 1]} : vector<1x18x18x4xf32> to vector<1x16x16x4xf32>
    %10 = vector.shape_cast %9 : vector<1x16x16x4xf32> to vector<16x16x4xf32>
    %11 = vector.shape_cast %10 : vector<16x16x4xf32> to vector<256x4xf32>
    %c0_6 = arith.constant 0 : index
    %c8 = arith.constant 8 : index
    %12 = vector.load %arg5[%c0_6, %c8] : memref<256x36xf32, #tpu.memory_space<vmem>>, vector<256x4xf32>
    tpu.vector_store %arg5[%c0_6, %c8], %11 {strides = array<i32>} : memref<256x36xf32, #tpu.memory_space<vmem>>, vector<256x4xf32>,
    %13 = vector.extract_strided_slice %0 {offsets = [0, 1, 0, 0], sizes = [1, 16, 16, 4], strides = [1, 1, 1, 1]} : vector<1x18x18x4xf32> to vector<1x16x16x4xf32>
    %14 = vector.shape_cast %13 : vector<1x16x16x4xf32> to vector<16x16x4xf32>
    %15 = vector.shape_cast %14 : vector<16x16x4xf32> to vector<256x4xf32>
    %c0_7 = arith.constant 0 : index
    %c12 = arith.constant 12 : index
    %16 = vector.load %arg5[%c0_7, %c12] : memref<256x36xf32, #tpu.memory_space<vmem>>, vector<256x4xf32>
    tpu.vector_store %arg5[%c0_7, %c12], %15 {strides = array<i32>} : memref<256x36xf32, #tpu.memory_space<vmem>>, vector<256x4xf32>,
    %17 = vector.extract_strided_slice %0 {offsets = [0, 1, 1, 0], sizes = [1, 16, 16, 4], strides = [1, 1, 1, 1]} : vector<1x18x18x4xf32> to vector<1x16x16x4xf32>
    %18 = vector.shape_cast %17 : vector<1x16x16x4xf32> to vector<16x16x4xf32>
    %19 = vector.shape_cast %18 : vector<16x16x4xf32> to vector<256x4xf32>
    %c0_8 = arith.constant 0 : index
    %c16 = arith.constant 16 : index
    %20 = vector.load %arg5[%c0_8, %c16] : memref<256x36xf32, #tpu.memory_space<vmem>>, vector<256x4xf32>
    tpu.vector_store %arg5[%c0_8, %c16], %19 {strides = array<i32>} : memref<256x36xf32, #tpu.memory_space<vmem>>, vector<256x4xf32>,
    %21 = vector.extract_strided_slice %0 {offsets = [0, 1, 2, 0], sizes = [1, 16, 16, 4], strides = [1, 1, 1, 1]} : vector<1x18x18x4xf32> to vector<1x16x16x4xf32>
    %22 = vector.shape_cast %21 : vector<1x16x16x4xf32> to vector<16x16x4xf32>
    %23 = vector.shape_cast %22 : vector<16x16x4xf32> to vector<256x4xf32>
    %c0_9 = arith.constant 0 : index
    %c20 = arith.constant 20 : index
    %24 = vector.load %arg5[%c0_9, %c20] : memref<256x36xf32, #tpu.memory_space<vmem>>, vector<256x4xf32>
    tpu.vector_store %arg5[%c0_9, %c20], %23 {strides = array<i32>} : memref<256x36xf32, #tpu.memory_space<vmem>>, vector<256x4xf32>,
    %25 = vector.extract_strided_slice %0 {offsets = [0, 2, 0, 0], sizes = [1, 16, 16, 4], strides = [1, 1, 1, 1]} : vector<1x18x18x4xf32> to vector<1x16x16x4xf32>
    %26 = vector.shape_cast %25 : vector<1x16x16x4xf32> to vector<16x16x4xf32>
    %27 = vector.shape_cast %26 : vector<16x16x4xf32> to vector<256x4xf32>
    %c0_10 = arith.constant 0 : index
    %c24 = arith.constant 24 : index
    %28 = vector.load %arg5[%c0_10, %c24] : memref<256x36xf32, #tpu.memory_space<vmem>>, vector<256x4xf32>
    tpu.vector_store %arg5[%c0_10, %c24], %27 {strides = array<i32>} : memref<256x36xf32, #tpu.memory_space<vmem>>, vector<256x4xf32>,
    %29 = vector.extract_strided_slice %0 {offsets = [0, 2, 1, 0], sizes = [1, 16, 16, 4], strides = [1, 1, 1, 1]} : vector<1x18x18x4xf32> to vector<1x16x16x4xf32>
    %30 = vector.shape_cast %29 : vector<1x16x16x4xf32> to vector<16x16x4xf32>
    %31 = vector.shape_cast %30 : vector<16x16x4xf32> to vector<256x4xf32>
    %c0_11 = arith.constant 0 : index
    %c28 = arith.constant 28 : index
    %32 = vector.load %arg5[%c0_11, %c28] : memref<256x36xf32, #tpu.memory_space<vmem>>, vector<256x4xf32>
    tpu.vector_store %arg5[%c0_11, %c28], %31 {strides = array<i32>} : memref<256x36xf32, #tpu.memory_space<vmem>>, vector<256x4xf32>,
    %33 = vector.extract_strided_slice %0 {offsets = [0, 2, 2, 0], sizes = [1, 16, 16, 4], strides = [1, 1, 1, 1]} : vector<1x18x18x4xf32> to vector<1x16x16x4xf32>
    %34 = vector.shape_cast %33 : vector<1x16x16x4xf32> to vector<16x16x4xf32>
    %35 = vector.shape_cast %34 : vector<16x16x4xf32> to vector<256x4xf32>
    %c0_12 = arith.constant 0 : index
    %c32 = arith.constant 32 : index
    %36 = vector.load %arg5[%c0_12, %c32] : memref<256x36xf32, #tpu.memory_space<vmem>>, vector<256x4xf32>
    tpu.vector_store %arg5[%c0_12, %c32], %35 {strides = array<i32>} : memref<256x36xf32, #tpu.memory_space<vmem>>, vector<256x4xf32>,
    %c0_13 = arith.constant 0 : index
    %c0_14 = arith.constant 0 : index
    %37 = vector.load %arg5[%c0_13, %c0_14] : memref<256x36xf32, #tpu.memory_space<vmem>>, vector<256x36xf32>
    %c0_15 = arith.constant 0 : index
    %c0_16 = arith.constant 0 : index
    %38 = vector.load %arg2[%c0_15, %c0_16] : memref<36x128xf32, #tpu.memory_space<vmem>>, vector<36x128xf32>
    %cst = arith.constant dense<0.000000e+00> : vector<256x128xf32>
    %39 = tpu.matmul %37, %38, %cst {dimension_numbers = #tpu.dot_dimension_numbers<[1], [0], [0], [1], [0, 0, 1, 1], [], []>} : vector<256x36xf32>, vector<36x128xf32>, vector<256x128xf32> -> vector<256x128xf32>
    %40 = vector.shape_cast %39 : vector<256x128xf32> to vector<1x16x16x128xf32>
    %c0_17 = arith.constant 0 : index
    %c0_18 = arith.constant 0 : index
    %c0_19 = arith.constant 0 : index
    %c0_20 = arith.constant 0 : index
    %41 = vector.load %arg3[%c0_17, %c0_18, %c0_19, %c0_20] : memref<1x16x16x128xf32, #tpu.memory_space<vmem>>, vector<1x16x16x128xf32>
    tpu.vector_store %arg3[%c0_17, %c0_18, %c0_19, %c0_20], %40 {strides = array<i32>} : memref<1x16x16x128xf32, #tpu.memory_space<vmem>>, vector<1x16x16x128xf32>,
    %cst_21 = arith.constant dense<0.000000e+00> : vector<128xf32>
    %42 = vector.multi_reduction <add>, %39, %cst_21 [0] : vector<256x128xf32> to vector<128xf32>
    %43 = vector.shape_cast %42 : vector<128xf32> to vector<1x128xf32>
    %44 = arith.mulf %39, %39 : vector<256x128xf32>
    %cst_22 = arith.constant dense<0.000000e+00> : vector<128xf32>
    %45 = vector.multi_reduction <add>, %44, %cst_22 [0] : vector<256x128xf32> to vector<128xf32>
    %46 = vector.shape_cast %45 : vector<128xf32> to vector<1x128xf32>
    %47 = tpu.concatenate %43, %46 in 0 : vector<1x128xf32>, vector<1x128xf32> -> vector<2x128xf32>
    %48 = vector.shape_cast %47 : vector<2x128xf32> to vector<1x2x128xf32>
    %c0_23 = arith.constant 0 : index
    %c0_24 = arith.constant 0 : index
    %c0_25 = arith.constant 0 : index
    %49 = vector.load %arg4[%c0_23, %c0_24, %c0_25] : memref<1x2x128xf32, #tpu.memory_space<vmem>>, vector<1x2x128xf32>
    tpu.vector_store %arg4[%c0_23, %c0_24, %c0_25], %48 {strides = array<i32>} : memref<1x2x128xf32, #tpu.memory_space<vmem>>, vector<1x2x128xf32>,
    return
  }
  func.func @transform_0(%arg0: i32) -> (i32, i32, i32, i32) {
    %c0_i32 = arith.constant 0 : i32
    %c0_i32_0 = arith.constant 0 : i32
    %c0_i32_1 = arith.constant 0 : i32
    %c0_i32_2 = arith.constant 0 : i32
    return %arg0, %c0_i32, %c0_i32_0, %c0_i32_1 : i32, i32, i32, i32
  }
  func.func @transform_1(%arg0: i32) -> (i32, i32) {
    %c0_i32 = arith.constant 0 : i32
    %c0_i32_0 = arith.constant 0 : i32
    %c0_i32_1 = arith.constant 0 : i32
    return %c0_i32, %c0_i32_0 : i32, i32
  }
  func.func @transform_2(%arg0: i32) -> (i32, i32, i32, i32) {
    %c0_i32 = arith.constant 0 : i32
    %c0_i32_0 = arith.constant 0 : i32
    %c0_i32_1 = arith.constant 0 : i32
    %c0_i32_2 = arith.constant 0 : i32
    return %arg0, %c0_i32, %c0_i32_0, %c0_i32_1 : i32, i32, i32, i32
  }
  func.func @transform_3(%arg0: i32) -> (i32, i32, i32) {
    %c0_i32 = arith.constant 0 : i32
    %c0_i32_0 = arith.constant 0 : i32
    %c0_i32_1 = arith.constant 0 : i32
    return %arg0, %c0_i32, %c0_i32_0 : i32, i32, i32
  }
}

module attributes {stable_mosaic.version = 11 : i64} {
  func.func @bn_apply_kernel(%arg0: i32, %arg1: memref<1x16x16x128xf32, #tpu.memory_space<vmem>>, %arg2: memref<1x128xf32, #tpu.memory_space<vmem>>, %arg3: memref<1x128xf32, #tpu.memory_space<vmem>>, %arg4: memref<1x16x16x128xf32, #tpu.memory_space<vmem>>) attributes {dimension_semantics = [#tpu.dimension_semantics<parallel>], iteration_bounds = array<i64: 2>, scalar_prefetch = 0 : i64, scratch_operands = 0 : i64, tpu.core_type = #tpu.core_type<tc>, window_params = [{transform_indices = @transform_0, window_bounds = array<i64: 1, 16, 16, 128>}, {pipeline_mode = #tpu.pipeline_mode<synchronous>, transform_indices = @transform_1, window_bounds = array<i64: 1, 128>}, {pipeline_mode = #tpu.pipeline_mode<synchronous>, transform_indices = @transform_2, window_bounds = array<i64: 1, 128>}, {transform_indices = @transform_3, window_bounds = array<i64: 1, 16, 16, 128>}]} {
    %c0 = arith.constant 0 : index
    %c0_0 = arith.constant 0 : index
    %c0_1 = arith.constant 0 : index
    %c0_2 = arith.constant 0 : index
    %0 = vector.load %arg1[%c0, %c0_0, %c0_1, %c0_2] : memref<1x16x16x128xf32, #tpu.memory_space<vmem>>, vector<1x16x16x128xf32>
    %c0_3 = arith.constant 0 : index
    %c0_4 = arith.constant 0 : index
    %1 = vector.load %arg2[%c0_3, %c0_4] : memref<1x128xf32, #tpu.memory_space<vmem>>, vector<1x128xf32>
    %2 = vector.shape_cast %1 : vector<1x128xf32> to vector<1x1x1x128xf32>
    %3 = vector.broadcast %2 : vector<1x1x1x128xf32> to vector<1x16x16x128xf32>
    %4 = arith.mulf %0, %3 : vector<1x16x16x128xf32>
    %c0_5 = arith.constant 0 : index
    %c0_6 = arith.constant 0 : index
    %5 = vector.load %arg3[%c0_5, %c0_6] : memref<1x128xf32, #tpu.memory_space<vmem>>, vector<1x128xf32>
    %6 = vector.shape_cast %5 : vector<1x128xf32> to vector<1x1x1x128xf32>
    %7 = vector.broadcast %6 : vector<1x1x1x128xf32> to vector<1x16x16x128xf32>
    %8 = arith.addf %4, %7 : vector<1x16x16x128xf32>
    %c0_7 = arith.constant 0 : index
    %c0_8 = arith.constant 0 : index
    %c0_9 = arith.constant 0 : index
    %c0_10 = arith.constant 0 : index
    %9 = vector.load %arg4[%c0_7, %c0_8, %c0_9, %c0_10] : memref<1x16x16x128xf32, #tpu.memory_space<vmem>>, vector<1x16x16x128xf32>
    tpu.vector_store %arg4[%c0_7, %c0_8, %c0_9, %c0_10], %8 {strides = array<i32>} : memref<1x16x16x128xf32, #tpu.memory_space<vmem>>, vector<1x16x16x128xf32>,
    return
  }
  func.func @transform_0(%arg0: i32) -> (i32, i32, i32, i32) {
    %c0_i32 = arith.constant 0 : i32
    %c0_i32_0 = arith.constant 0 : i32
    %c0_i32_1 = arith.constant 0 : i32
    %c0_i32_2 = arith.constant 0 : i32
    return %arg0, %c0_i32, %c0_i32_0, %c0_i32_1 : i32, i32, i32, i32
  }
  func.func @transform_1(%arg0: i32) -> (i32, i32) {
    %c0_i32 = arith.constant 0 : i32
    %c0_i32_0 = arith.constant 0 : i32
    %c0_i32_1 = arith.constant 0 : i32
    return %c0_i32, %c0_i32_0 : i32, i32
  }
  func.func @transform_2(%arg0: i32) -> (i32, i32) {
    %c0_i32 = arith.constant 0 : i32
    %c0_i32_0 = arith.constant 0 : i32
    %c0_i32_1 = arith.constant 0 : i32
    return %c0_i32, %c0_i32_0 : i32, i32
  }
  func.func @transform_3(%arg0: i32) -> (i32, i32, i32, i32) {
    %c0_i32 = arith.constant 0 : i32
    %c0_i32_0 = arith.constant 0 : i32
    %c0_i32_1 = arith.constant 0 : i32
    %c0_i32_2 = arith.constant 0 : i32
    return %arg0, %c0_i32, %c0_i32_0, %c0_i32_1 : i32, i32, i32, i32
  }
}

</mosaic_0001>

<llo_original>
// kernel: masked_conv_layer.3
$region0: #{masked_conv_layer.3}
  #allocation0 [shape = 'u32[]', space=smem, size = 0x4, offset = 0x4, fixed_abs, tag = 'smem constant byte address 0x4 - core index']
  #allocation1 [shape = 'u32[144,128]{1,0:T(1,128)}', space=vmem, size = 0x12000, scoped, tag = 'internal scratch']
  %s0 = inlined_call_operand.vmem [shape: f32[2,16,16,128], index: 0, kind: input, shape index: {}]
  %s1 = inlined_call_operand.vmem [shape: f32[1,128], index: 1, kind: input, shape index: {}]
  %s2 = inlined_call_operand.vmem [shape: f32[1,128], index: 2, kind: input, shape index: {}]
  %s3 = inlined_call_operand.vmem [shape: f32[2,16,16,128], index: 3, kind: output, shape index: {}]
  %s4 = sld [smem:[#allocation0]]
  $region45: #{masked_conv_layer.3} parent=0
    _
  %s6 = ssub.s32 1, %s4
  %s7 = scalar_select 0, %s6, %s4
  loop: start=0, step=1, limit=4
  $region2: #{masked_conv_layer.3} parent=0 // loop_pre_header
    _
  $region3: #{masked_conv_layer.3} parent=0 // loop_header
    %s9 = sphi 0, %s13
    %p10 = scmp.ge.s32.totalorder %s9, 4
    %s19 = sphi 0, %s21
    %s22 = sphi 0, %s19
    %s23 = sphi 0, %s22
    %s39 = sphi 0, %s23
    %s43 = sphi 0, %s43
    %s45 = sphi 0, %s43
    %s46 = sphi 0, %s45
    %s60 = sphi 0, %s46
    %s64 = sphi 0, %s64
    %s66 = sphi 0, %s64
    %s67 = sphi 0, %s66
    %s81 = sphi 0, %s67
    %s87 = sphi 0, %s89
    %s90 = sphi 0, %s87
    %s91 = sphi 0, %s90
    %s107 = sphi 0, %s91
  $region4: #{masked_conv_layer.3} parent=0 // loop_header_branch
    %12 = sbr.rel (%p10) target = $region8
  $region5: #{masked_conv_layer.3} parent=0 // loop_body
    %s14 = ssub.s32 %s9, 1
    %s15 = ssub.s32 %s9, 2
    %s16 = sadd.s32 %s9, 1
    %s17 = ssub.s32 %s9, %s16
    %p18 = scmp.eq.s32.totalorder %s17, 0
    %s20 = sadd.s32 %s19, 1
    %s21 = scalar_select %p18, %s19, %s20
    %p24 = pneg %p18
    %p25 = scmp.eq.s32.totalorder %s9, 1
    %p26 = por %p24, %p25
    %p27 = scmp.ne.s32.totalorder %s19, %s22
    %p28 = scmp.eq.s32.totalorder %s9, 0
    %p29 = por %p27, %p28
    %p30 = scmp.ne.s32.totalorder %s19, %s22
    %p31 = scmp.eq.s32.totalorder %s14, 1
    %p32 = por %p30, %p31
    %p33 = scmp.ne.s32.totalorder %s22, %s23
    %p34 = scmp.eq.s32.totalorder %s14, 0
    %p35 = por %p33, %p34
    %p36 = scmp.ne.s32.totalorder %s22, %s23
    %p37 = scmp.eq.s32.totalorder %s15, 1
    %p38 = por %p36, %p37
    %p40 = scmp.ne.s32.totalorder %s23, %s39
    %p41 = scmp.eq.s32.totalorder %s15, 0
    %p42 = por %p40, %p41
    %s44 = sadd.s32 %s43, 1
    %p47 = scmp.eq.s32.totalorder %s9, 1
    %p48 = scmp.ne.s32.totalorder %s43, %s45
    %p49 = scmp.eq.s32.totalorder %s9, 0
    %p50 = por %p48, %p49
    %p51 = scmp.ne.s32.totalorder %s43, %s45
    %p52 = scmp.eq.s32.totalorder %s14, 1
    %p53 = por %p51, %p52
    %p54 = scmp.ne.s32.totalorder %s45, %s46
    %p55 = scmp.eq.s32.totalorder %s14, 0
    %p56 = por %p54, %p55
    %p57 = scmp.ne.s32.totalorder %s45, %s46
    %p58 = scmp.eq.s32.totalorder %s15, 1
    %p59 = por %p57, %p58
    %p61 = scmp.ne.s32.totalorder %s46, %s60
    %p62 = scmp.eq.s32.totalorder %s15, 0
    %p63 = por %p61, %p62
    %s65 = sadd.s32 %s64, 1
    %p68 = scmp.eq.s32.totalorder %s9, 1
    %p69 = scmp.ne.s32.totalorder %s64, %s66
    %p70 = scmp.eq.s32.totalorder %s9, 0
    %p71 = por %p69, %p70
    %p72 = scmp.ne.s32.totalorder %s64, %s66
    %p73 = scmp.eq.s32.totalorder %s14, 1
    %p74 = por %p72, %p73
    %p75 = scmp.ne.s32.totalorder %s66, %s67
    %p76 = scmp.eq.s32.totalorder %s14, 0
    %p77 = por %p75, %p76
    %p78 = scmp.ne.s32.totalorder %s66, %s67
    %p79 = scmp.eq.s32.totalorder %s15, 1
    %p80 = por %p78, %p79
    %p82 = scmp.ne.s32.totalorder %s67, %s81
    %p83 = scmp.eq.s32.totalorder %s15, 0
    %p84 = por %p82, %p83
    %s85 = ssub.s32 %s9, %s16
    %p86 = scmp.eq.s32.totalorder %s85, 0
    %s88 = sadd.s32 %s87, 1
    %s89 = scalar_select %p86, %s87, %s88
    %p92 = pneg %p86
    %p93 = scmp.eq.s32.totalorder %s9, 1
    %p94 = por %p92, %p93
    %p95 = scmp.ne.s32.totalorder %s87, %s90
    %p96 = scmp.eq.s32.totalorder %s9, 0
    %p97 = por %p95, %p96
    %p98 = scmp.ne.s32.totalorder %s87, %s90
    %p99 = scmp.eq.s32.totalorder %s14, 1
    %p100 = por %p98, %p99
    %p101 = scmp.ne.s32.totalorder %s90, %s91
    %p102 = scmp.eq.s32.totalorder %s14, 0
    %p103 = por %p101, %p102
    %p104 = scmp.ne.s32.totalorder %s90, %s91
    %p105 = scmp.eq.s32.totalorder %s15, 1
    %p106 = por %p104, %p105
    %p108 = scmp.ne.s32.totalorder %s91, %s107
    %p109 = scmp.eq.s32.totalorder %s15, 0
    %p110 = por %p108, %p109
    %p111 = scmp.le.s32.totalorder 1, %s9
    %p112 = scmp.lt.s32.totalorder %s9, 3
    %p113 = pnand %p111, %p112
    %p114 = pneg %p113
    // Predicated region
    $region9: #{masked_conv_layer.3} parent=5 // pred_check
      _
    $region10: #{masked_conv_layer.3} parent=5 // pred_check_branch
      %116 = sbr.rel (%p113) target = $region12
    $region11: #{masked_conv_layer.3} parent=5 // pred_region
      %s117 = ssub.s32 %s9, 1
      // Predicated region
      $region13: #{masked_conv_layer.3} parent=11 // pred_check
        %p118 = pneg %p56
      $region14: #{masked_conv_layer.3} parent=11 // pred_check_branch
        %120 = sbr.rel (%p118) target = $region16
      $region15: #{masked_conv_layer.3} parent=11 // pred_region
        _
      $region16: #{masked_conv_layer.3} parent=11 // pred_fallthru
        _
      // Predicated region
      $region17: #{masked_conv_layer.3} parent=11 // pred_check
        %p121 = pneg %p77
      $region18: #{masked_conv_layer.3} parent=11 // pred_check_branch
        %123 = sbr.rel (%p121) target = $region20
      $region19: #{masked_conv_layer.3} parent=11 // pred_region
        _
      $region20: #{masked_conv_layer.3} parent=11 // pred_fallthru
        _
    $region12: #{masked_conv_layer.3} parent=5 // pred_fallthru
      _
    %p124 = scmp.lt.s32.totalorder %s9, 2
    // Predicated region
    $region21: #{masked_conv_layer.3} parent=5 // pred_check
      %p125 = pneg %p124
    $region22: #{masked_conv_layer.3} parent=5 // pred_check_branch
      %127 = sbr.rel (%p125) target = $region24
    $region23: #{masked_conv_layer.3} parent=5 // pred_region
      // Predicated region
      $region25: #{masked_conv_layer.3} parent=23 // pred_check
        %p128 = pneg %p29
      $region26: #{masked_conv_layer.3} parent=23 // pred_check_branch
        %130 = sbr.rel (%p128) target = $region28
      $region27: #{masked_conv_layer.3} parent=23 // pred_region
        %p131 = scmp.lt.s32.totalorder %s9, 1
        %s132 = scalar_select %p131, %s9, 1
        %s133 = smul.addr %s132, 32
        %s134 = smul.addr %s133, 8
        %s135 = scalar_lea.vmem %s0, %s134
      $region28: #{masked_conv_layer.3} parent=23 // pred_fallthru
        _
    $region24: #{masked_conv_layer.3} parent=5 // pred_fallthru
      _
    %p136 = scmp.le.s32.totalorder 1, %s9
    %p137 = scmp.lt.s32.totalorder %s9, 3
    %p138 = pnand %p136, %p137
    %p139 = pneg %p138
    // Predicated region
    $region29: #{masked_conv_layer.3} parent=5 // pred_check
      _
    $region30: #{masked_conv_layer.3} parent=5 // pred_check_branch
      %141 = sbr.rel (%p138) target = $region32
    $region31: #{masked_conv_layer.3} parent=5 // pred_region
      %s142 = ssub.s32 %s9, 1
      %p143 = scmp.lt.s32.totalorder %s14, 1
      %s144 = scalar_select %p143, %s14, 1
      %s145 = smul.addr %s144, 32
      %s146 = smul.addr %s145, 8
      %s147 = scalar_lea.vmem %s0, %s146
      %p148 = pneg %p35
      %p149 = pneg %p32
      %p150 = pneg %p56
      %p151 = pneg %p53
      %p152 = pneg %p77
      %p153 = pneg %p74
      %p154 = pneg %p103
      %p155 = pneg %p100
      %p156 = scmp.lt.s32.totalorder %s14, 1
      %s157 = scalar_select %p156, %s14, 1
      %s158 = smul.addr %s157, 32
      %s159 = smul.addr %s158, 8
      %s160 = scalar_lea.vmem %s3, %s159
      %p161 = scmp.lt.s32.totalorder %s14, 1
      %s162 = scalar_select %p161, %s14, 1
      %s163 = smul.addr %s162, 32
      %s164 = smul.addr %s163, 8
      %s165 = scalar_lea.vmem %s0, %s164
      %p166 = scmp.lt.s32.totalorder %s14, 1
      %s167 = scalar_select %p166, %s14, 1
      %s168 = smul.addr %s167, 32
      %s169 = smul.addr %s168, 8
      %s170 = scalar_lea.vmem %s3, %s169
      %v171 = vld [vmem:[%s165] sm:$0xff]
      %v172 = vld [vmem:[%s165 + $0x8] sm:$0xff]
      %v173 = vld [vmem:[%s165 + $0x10] sm:$0xff]
      %v174 = vld [vmem:[%s165 + $0x18] sm:$0xff]
      %v175 = vld [vmem:[%s165 + $0x20] sm:$0xff]
      %v176 = vld [vmem:[%s165 + $0x28] sm:$0xff]
      %v177 = vld [vmem:[%s165 + $0x30] sm:$0xff]
      %v178 = vld [vmem:[%s165 + $0x38] sm:$0xff]
      %v179 = vld [vmem:[%s165 + $0x40] sm:$0xff]
      %v180 = vld [vmem:[%s165 + $0x48] sm:$0xff]
      %v181 = vld [vmem:[%s165 + $0x50] sm:$0xff]
      %v182 = vld [vmem:[%s165 + $0x58] sm:$0xff]
      %v183 = vld [vmem:[%s165 + $0x60] sm:$0xff]
      %v184 = vld [vmem:[%s165 + $0x68] sm:$0xff]
      %v185 = vld [vmem:[%s165 + $0x70] sm:$0xff]
      %v186 = vld [vmem:[%s165 + $0x78] sm:$0xff]
      %v187 = vld [vmem:[%s165 + $0x80] sm:$0xff]
      %v188 = vld [vmem:[%s165 + $0x88] sm:$0xff]
      %v189 = vld [vmem:[%s165 + $0x90] sm:$0xff]
      %v190 = vld [vmem:[%s165 + $0x98] sm:$0xff]
      %v191 = vld [vmem:[%s165 + $0xa0] sm:$0xff]
      %v192 = vld [vmem:[%s165 + $0xa8] sm:$0xff]
      %v193 = vld [vmem:[%s165 + $0xb0] sm:$0xff]
      %v194 = vld [vmem:[%s165 + $0xb8] sm:$0xff]
      %v195 = vld [vmem:[%s165 + $0xc0] sm:$0xff]
      %v196 = vld [vmem:[%s165 + $0xc8] sm:$0xff]
      %v197 = vld [vmem:[%s165 + $0xd0] sm:$0xff]
      %v198 = vld [vmem:[%s165 + $0xd8] sm:$0xff]
      %v199 = vld [vmem:[%s165 + $0xe0] sm:$0xff]
      %v200 = vld [vmem:[%s165 + $0xe8] sm:$0xff]
      %v201 = vld [vmem:[%s165 + $0xf0] sm:$0xff]
      %v202 = vld [vmem:[%s165 + $0xf8] sm:$0xff]
      %v203 = vld [vmem:[%s1] sm:$0x1]
      %v205 = vlaneseq
      %v206 = vshrl.u32 %v205, 7
      %v207 = vsub.s32 0, %v206
      %v208 = vrot.slane %v203, %v207
      %v210 = vmul.f32 %v171, %v208
      %v211 = vmul.f32 %v172, %v208
      %v212 = vmul.f32 %v173, %v208
      %v213 = vmul.f32 %v174, %v208
      %v214 = vmul.f32 %v175, %v208
      %v215 = vmul.f32 %v176, %v208
      %v216 = vmul.f32 %v177, %v208
      %v217 = vmul.f32 %v178, %v208
      %v218 = vmul.f32 %v179, %v208
      %v219 = vmul.f32 %v180, %v208
      %v220 = vmul.f32 %v181, %v208
      %v221 = vmul.f32 %v182, %v208
      %v222 = vmul.f32 %v183, %v208
      %v223 = vmul.f32 %v184, %v208
      %v224 = vmul.f32 %v185, %v208
      %v225 = vmul.f32 %v186, %v208
      %v226 = vmul.f32 %v187, %v208
      %v227 = vmul.f32 %v188, %v208
      %v228 = vmul.f32 %v189, %v208
      %v229 = vmul.f32 %v190, %v208
      %v230 = vmul.f32 %v191, %v208
      %v231 = vmul.f32 %v192, %v208
      %v232 = vmul.f32 %v193, %v208
      %v233 = vmul.f32 %v194, %v208
      %v234 = vmul.f32 %v195, %v208
      %v235 = vmul.f32 %v196, %v208
      %v236 = vmul.f32 %v197, %v208
      %v237 = vmul.f32 %v198, %v208
      %v238 = vmul.f32 %v199, %v208
      %v239 = vmul.f32 %v200, %v208
      %v240 = vmul.f32 %v201, %v208
      %v241 = vmul.f32 %v202, %v208
      %v242 = vld [vmem:[%s2] sm:$0x1]
      %v244 = vlaneseq
      %v245 = vshrl.u32 %v244, 7
      %v246 = vsub.s32 0, %v245
      %v247 = vrot.slane %v242, %v246
      %v249 = vadd.f32 %v210, %v247
      %v250 = vadd.f32 %v211, %v247
      %v251 = vadd.f32 %v212, %v247
      %v252 = vadd.f32 %v213, %v247
      %v253 = vadd.f32 %v214, %v247
      %v254 = vadd.f32 %v215, %v247
      %v255 = vadd.f32 %v216, %v247
      %v256 = vadd.f32 %v217, %v247
      %v257 = vadd.f32 %v218, %v247
      %v258 = vadd.f32 %v219, %v247
      %v259 = vadd.f32 %v220, %v247
      %v260 = vadd.f32 %v221, %v247
      %v261 = vadd.f32 %v222, %v247
      %v262 = vadd.f32 %v223, %v247
      %v263 = vadd.f32 %v224, %v247
      %v264 = vadd.f32 %v225, %v247
      %v265 = vadd.f32 %v226, %v247
      %v266 = vadd.f32 %v227, %v247
      %v267 = vadd.f32 %v228, %v247
      %v268 = vadd.f32 %v229, %v247
      %v269 = vadd.f32 %v230, %v247
      %v270 = vadd.f32 %v231, %v247
      %v271 = vadd.f32 %v232, %v247
      %v272 = vadd.f32 %v233, %v247
      %v273 = vadd.f32 %v234, %v247
      %v274 = vadd.f32 %v235, %v247
      %v275 = vadd.f32 %v236, %v247
      %v276 = vadd.f32 %v237, %v247
      %v277 = vadd.f32 %v238, %v247
      %v278 = vadd.f32 %v239, %v247
      %v279 = vadd.f32 %v240, %v247
      %v280 = vadd.f32 %v241, %v247
      %281 = vst [vmem:[%s170] sm:$0xff] %v249
      %282 = vst [vmem:[%s170 + $0x8] sm:$0xff] %v250
      %283 = vst [vmem:[%s170 + $0x10] sm:$0xff] %v251
      %284 = vst [vmem:[%s170 + $0x18] sm:$0xff] %v252
      %285 = vst [vmem:[%s170 + $0x20] sm:$0xff] %v253
      %286 = vst [vmem:[%s170 + $0x28] sm:$0xff] %v254
      %287 = vst [vmem:[%s170 + $0x30] sm:$0xff] %v255
      %288 = vst [vmem:[%s170 + $0x38] sm:$0xff] %v256
      %289 = vst [vmem:[%s170 + $0x40] sm:$0xff] %v257
      %290 = vst [vmem:[%s170 + $0x48] sm:$0xff] %v258
      %291 = vst [vmem:[%s170 + $0x50] sm:$0xff] %v259
      %292 = vst [vmem:[%s170 + $0x58] sm:$0xff] %v260
      %293 = vst [vmem:[%s170 + $0x60] sm:$0xff] %v261
      %294 = vst [vmem:[%s170 + $0x68] sm:$0xff] %v262
      %295 = vst [vmem:[%s170 + $0x70] sm:$0xff] %v263
      %296 = vst [vmem:[%s170 + $0x78] sm:$0xff] %v264
      %297 = vst [vmem:[%s170 + $0x80] sm:$0xff] %v265
      %298 = vst [vmem:[%s170 + $0x88] sm:$0xff] %v266
      %299 = vst [vmem:[%s170 + $0x90] sm:$0xff] %v267
      %300 = vst [vmem:[%s170 + $0x98] sm:$0xff] %v268
      %301 = vst [vmem:[%s170 + $0xa0] sm:$0xff] %v269
      %302 = vst [vmem:[%s170 + $0xa8] sm:$0xff] %v270
      %303 = vst [vmem:[%s170 + $0xb0] sm:$0xff] %v271
      %304 = vst [vmem:[%s170 + $0xb8] sm:$0xff] %v272
      %305 = vst [vmem:[%s170 + $0xc0] sm:$0xff] %v273
      %306 = vst [vmem:[%s170 + $0xc8] sm:$0xff] %v274
      %307 = vst [vmem:[%s170 + $0xd0] sm:$0xff] %v275
      %308 = vst [vmem:[%s170 + $0xd8] sm:$0xff] %v276
      %309 = vst [vmem:[%s170 + $0xe0] sm:$0xff] %v277
      %310 = vst [vmem:[%s170 + $0xe8] sm:$0xff] %v278
      %311 = vst [vmem:[%s170 + $0xf0] sm:$0xff] %v279
      %312 = vst [vmem:[%s170 + $0xf8] sm:$0xff] %v280
      %p313 = scmp.lt.s32.totalorder %s14, 1
      %s314 = scalar_select %p313, %s14, 1
      %s315 = smul.addr %s314, 32
      %s316 = smul.addr %s315, 8
      %s317 = scalar_lea.vmem %s3, %s316
      // Predicated region
      $region33: #{masked_conv_layer.3} parent=31 // pred_check
        %p318 = pneg %p100
      $region34: #{masked_conv_layer.3} parent=31 // pred_check_branch
        %320 = sbr.rel (%p318) target = $region36
      $region35: #{masked_conv_layer.3} parent=31 // pred_region
        _
      $region36: #{masked_conv_layer.3} parent=31 // pred_fallthru
        _
    $region32: #{masked_conv_layer.3} parent=5 // pred_fallthru
      _
    %p321 = scmp.le.s32.totalorder 2, %s9
    // Predicated region
    $region37: #{masked_conv_layer.3} parent=5 // pred_check
      %p322 = pneg %p321
    $region38: #{masked_conv_layer.3} parent=5 // pred_check_branch
      %324 = sbr.rel (%p322) target = $region40
    $region39: #{masked_conv_layer.3} parent=5 // pred_region
      %s325 = ssub.s32 %s9, 2
      // Predicated region
      $region41: #{masked_conv_layer.3} parent=39 // pred_check
        %p326 = pneg %p106
      $region42: #{masked_conv_layer.3} parent=39 // pred_check_branch
        %328 = sbr.rel (%p326) target = $region44
      $region43: #{masked_conv_layer.3} parent=39 // pred_region
        %p329 = scmp.lt.s32.totalorder %s15, 1
        %s330 = scalar_select %p329, %s15, 1
        %s331 = smul.addr %s330, 32
        %s332 = smul.addr %s331, 8
        %s333 = scalar_lea.vmem %s3, %s332
      $region44: #{masked_conv_layer.3} parent=39 // pred_fallthru
        _
    $region40: #{masked_conv_layer.3} parent=5 // pred_fallthru
      _
  $region6: #{masked_conv_layer.3} parent=0 // loop_footer
    %s13 = sadd.s32 1, %s9
  $region7: #{masked_conv_layer.3} parent=0 // loop_footer_branch
    %8 = sbr.rel target = $region3
  $region8: #{masked_conv_layer.3} parent=0 // loop_exit
    _

// kernel: masked_conv_layer.2
$region0: #{masked_conv_layer.2}
  #allocation0 [shape = 'u32[]', space=smem, size = 0x4, offset = 0x4, fixed_abs, tag = 'smem constant byte address 0x4 - core index']
  #allocation1 [shape = 'u32[144,128]{1,0:T(1,128)}', space=vmem, size = 0x12000, scoped, tag = 'internal scratch']
  #allocation2 [shape = 'f32[256,36]{1,0:T(8,128)}', space=vmem, size = 0x20000, scoped, tag = 'scratch operand']
  %s0 = inlined_call_operand.vmem [shape: f32[2,18,18,4], index: 0, kind: input, shape index: {}]
  %s1 = inlined_call_operand.vmem [shape: f32[36,128], index: 1, kind: input, shape index: {}]
  %s2 = inlined_call_operand.vmem [shape: f32[2,16,16,128], index: 2, kind: output, shape index: {0}]
  %s3 = inlined_call_operand.vmem [shape: f32[2,2,128], index: 3, kind: output, shape index: {1}]
  %4 = xla_tuple %s2, %s3
  %s5 = sld [smem:[#allocation0]]
  $region49: #{masked_conv_layer.2} parent=0
    _
  %s7 = ssub.s32 1, %s5
  %s8 = scalar_select 0, %s7, %s5
  loop: start=0, step=1, limit=4
  $region2: #{masked_conv_layer.2} parent=0 // loop_pre_header
    _
  $region3: #{masked_conv_layer.2} parent=0 // loop_header
    %s10 = sphi 0, %s14
    %p11 = scmp.ge.s32.totalorder %s10, 4
    %s20 = sphi 0, %s22
    %s23 = sphi 0, %s20
    %s24 = sphi 0, %s23
    %s40 = sphi 0, %s24
    %s44 = sphi 0, %s44
    %s46 = sphi 0, %s44
    %s47 = sphi 0, %s46
    %s61 = sphi 0, %s47
    %s67 = sphi 0, %s69
    %s70 = sphi 0, %s67
    %s71 = sphi 0, %s70
    %s87 = sphi 0, %s71
    %s93 = sphi 0, %s95
    %s96 = sphi 0, %s93
    %s97 = sphi 0, %s96
    %s113 = sphi 0, %s97
  $region4: #{masked_conv_layer.2} parent=0 // loop_header_branch
    %13 = sbr.rel (%p11) target = $region8
  $region5: #{masked_conv_layer.2} parent=0 // loop_body
    %s15 = ssub.s32 %s10, 1
    %s16 = ssub.s32 %s10, 2
    %s17 = sadd.s32 %s10, 1
    %s18 = ssub.s32 %s10, %s17
    %p19 = scmp.eq.s32.totalorder %s18, 0
    %s21 = sadd.s32 %s20, 1
    %s22 = scalar_select %p19, %s20, %s21
    %p25 = pneg %p19
    %p26 = scmp.eq.s32.totalorder %s10, 1
    %p27 = por %p25, %p26
    %p28 = scmp.ne.s32.totalorder %s20, %s23
    %p29 = scmp.eq.s32.totalorder %s10, 0
    %p30 = por %p28, %p29
    %p31 = scmp.ne.s32.totalorder %s20, %s23
    %p32 = scmp.eq.s32.totalorder %s15, 1
    %p33 = por %p31, %p32
    %p34 = scmp.ne.s32.totalorder %s23, %s24
    %p35 = scmp.eq.s32.totalorder %s15, 0
    %p36 = por %p34, %p35
    %p37 = scmp.ne.s32.totalorder %s23, %s24
    %p38 = scmp.eq.s32.totalorder %s16, 1
    %p39 = por %p37, %p38
    %p41 = scmp.ne.s32.totalorder %s24, %s40
    %p42 = scmp.eq.s32.totalorder %s16, 0
    %p43 = por %p41, %p42
    %s45 = sadd.s32 %s44, 1
    %p48 = scmp.eq.s32.totalorder %s10, 1
    %p49 = scmp.ne.s32.totalorder %s44, %s46
    %p50 = scmp.eq.s32.totalorder %s10, 0
    %p51 = por %p49, %p50
    %p52 = scmp.ne.s32.totalorder %s44, %s46
    %p53 = scmp.eq.s32.totalorder %s15, 1
    %p54 = por %p52, %p53
    %p55 = scmp.ne.s32.totalorder %s46, %s47
    %p56 = scmp.eq.s32.totalorder %s15, 0
    %p57 = por %p55, %p56
    %p58 = scmp.ne.s32.totalorder %s46, %s47
    %p59 = scmp.eq.s32.totalorder %s16, 1
    %p60 = por %p58, %p59
    %p62 = scmp.ne.s32.totalorder %s47, %s61
    %p63 = scmp.eq.s32.totalorder %s16, 0
    %p64 = por %p62, %p63
    %s65 = ssub.s32 %s10, %s17
    %p66 = scmp.eq.s32.totalorder %s65, 0
    %s68 = sadd.s32 %s67, 1
    %s69 = scalar_select %p66, %s67, %s68
    %p72 = pneg %p66
    %p73 = scmp.eq.s32.totalorder %s10, 1
    %p74 = por %p72, %p73
    %p75 = scmp.ne.s32.totalorder %s67, %s70
    %p76 = scmp.eq.s32.totalorder %s10, 0
    %p77 = por %p75, %p76
    %p78 = scmp.ne.s32.totalorder %s67, %s70
    %p79 = scmp.eq.s32.totalorder %s15, 1
    %p80 = por %p78, %p79
    %p81 = scmp.ne.s32.totalorder %s70, %s71
    %p82 = scmp.eq.s32.totalorder %s15, 0
    %p83 = por %p81, %p82
    %p84 = scmp.ne.s32.totalorder %s70, %s71
    %p85 = scmp.eq.s32.totalorder %s16, 1
    %p86 = por %p84, %p85
    %p88 = scmp.ne.s32.totalorder %s71, %s87
    %p89 = scmp.eq.s32.totalorder %s16, 0
    %p90 = por %p88, %p89
    %s91 = ssub.s32 %s10, %s17
    %p92 = scmp.eq.s32.totalorder %s91, 0
    %s94 = sadd.s32 %s93, 1
    %s95 = scalar_select %p92, %s93, %s94
    %p98 = pneg %p92
    %p99 = scmp.eq.s32.totalorder %s10, 1
    %p100 = por %p98, %p99
    %p101 = scmp.ne.s32.totalorder %s93, %s96
    %p102 = scmp.eq.s32.totalorder %s10, 0
    %p103 = por %p101, %p102
    %p104 = scmp.ne.s32.totalorder %s93, %s96
    %p105 = scmp.eq.s32.totalorder %s15, 1
    %p106 = por %p104, %p105
    %p107 = scmp.ne.s32.totalorder %s96, %s97
    %p108 = scmp.eq.s32.totalorder %s15, 0
    %p109 = por %p107, %p108
    %p110 = scmp.ne.s32.totalorder %s96, %s97
    %p111 = scmp.eq.s32.totalorder %s16, 1
    %p112 = por %p110, %p111
    %p114 = scmp.ne.s32.totalorder %s97, %s113
    %p115 = scmp.eq.s32.totalorder %s16, 0
    %p116 = por %p114, %p115
    %p117 = scmp.le.s32.totalorder 1, %s10
    %p118 = scmp.lt.s32.totalorder %s10, 3
    %p119 = pnand %p117, %p118
    %p120 = pneg %p119
    // Predicated region
    $region9: #{masked_conv_layer.2} parent=5 // pred_check
      _
    $region10: #{masked_conv_layer.2} parent=5 // pred_check_branch
      %122 = sbr.rel (%p119) target = $region12
    $region11: #{masked_conv_layer.2} parent=5 // pred_region
      %s123 = ssub.s32 %s10, 1
      // Predicated region
      $region13: #{masked_conv_layer.2} parent=11 // pred_check
        %p124 = pneg %p57
      $region14: #{masked_conv_layer.2} parent=11 // pred_check_branch
        %126 = sbr.rel (%p124) target = $region16
      $region15: #{masked_conv_layer.2} parent=11 // pred_region
        _
      $region16: #{masked_conv_layer.2} parent=11 // pred_fallthru
        _
    $region12: #{masked_conv_layer.2} parent=5 // pred_fallthru
      _
    %p127 = scmp.lt.s32.totalorder %s10, 2
    // Predicated region
    $region17: #{masked_conv_layer.2} parent=5 // pred_check
      %p128 = pneg %p127
    $region18: #{masked_conv_layer.2} parent=5 // pred_check_branch
      %130 = sbr.rel (%p128) target = $region20
    $region19: #{masked_conv_layer.2} parent=5 // pred_region
      // Predicated region
      $region21: #{masked_conv_layer.2} parent=19 // pred_check
        %p131 = pneg %p30
      $region22: #{masked_conv_layer.2} parent=19 // pred_check_branch
        %133 = sbr.rel (%p131) target = $region24
      $region23: #{masked_conv_layer.2} parent=19 // pred_region
        %p134 = scmp.lt.s32.totalorder %s10, 1
        %s135 = scalar_select %p134, %s10, 1
        %s136 = smul.addr %s135, 54
        %s137 = smul.addr %s136, 8
        %s138 = scalar_lea.vmem %s0, %s137
      $region24: #{masked_conv_layer.2} parent=19 // pred_fallthru
        _
    $region20: #{masked_conv_layer.2} parent=5 // pred_fallthru
      _
    %p139 = scmp.le.s32.totalorder 1, %s10
    %p140 = scmp.lt.s32.totalorder %s10, 3
    %p141 = pnand %p139, %p140
    %p142 = pneg %p141
    // Predicated region
    $region25: #{masked_conv_layer.2} parent=5 // pred_check
      _
    $region26: #{masked_conv_layer.2} parent=5 // pred_check_branch
      %144 = sbr.rel (%p141) target = $region28
    $region27: #{masked_conv_layer.2} parent=5 // pred_region
      %s145 = ssub.s32 %s10, 1
      %p146 = scmp.lt.s32.totalorder %s15, 1
      %s147 = scalar_select %p146, %s15, 1
      %s148 = smul.addr %s147, 54
      %s149 = smul.addr %s148, 8
      %s150 = scalar_lea.vmem %s0, %s149
      %p151 = pneg %p36
      %p152 = pneg %p33
      %p153 = pneg %p57
      %p154 = pneg %p54
      %p155 = pneg %p83
      %p156 = pneg %p80
      %p157 = scmp.lt.s32.totalorder %s15, 1
      %s158 = scalar_select %p157, %s15, 1
      %s159 = smul.addr %s158, 32
      %s160 = smul.addr %s159, 8
      %s161 = scalar_lea.vmem %s2, %s160
      %p162 = pneg %p109
      %p163 = pneg %p106
      %p164 = scmp.lt.s32.totalorder %s15, 1
      %s165 = scalar_select %p164, %s15, 1
      %s166 = smul.addr %s165, 2
      %s167 = scalar_lea.vmem %s3, %s166
      %p168 = scmp.lt.s32.totalorder %s15, 1
      %s169 = scalar_select %p168, %s15, 1
      %s170 = smul.addr %s169, 54
      %s171 = smul.addr %s170, 8
      %s172 = scalar_lea.vmem %s0, %s171
      %p173 = scmp.lt.s32.totalorder %s15, 1
      %s174 = scalar_select %p173, %s15, 1
      %s175 = smul.addr %s174, 32
      %s176 = smul.addr %s175, 8
      %s177 = scalar_lea.vmem %s2, %s176
      %p178 = scmp.lt.s32.totalorder %s15, 1
      %s179 = scalar_select %p178, %s15, 1
      %s180 = smul.addr %s179, 2
      %s181 = scalar_lea.vmem %s3, %s180
      %v182 = vld [vmem:[%s172] sm:$0xff]
      %v183 = vld [vmem:[%s172 + $0x8] sm:$0xff]
      %v184 = vld [vmem:[%s172 + $0x10] sm:$0x3]
      %v185 = vld [vmem:[%s172 + $0x18] sm:$0xff]
      %v186 = vld [vmem:[%s172 + $0x20] sm:$0xff]
      %v187 = vld [vmem:[%s172 + $0x28] sm:$0x3]
      %v188 = vld [vmem:[%s172 + $0x30] sm:$0xff]
      %v189 = vld [vmem:[%s172 + $0x38] sm:$0xff]
      %v190 = vld [vmem:[%s172 + $0x40] sm:$0x3]
      %v191 = vld [vmem:[%s172 + $0x48] sm:$0xff]
      %v192 = vld [vmem:[%s172 + $0x50] sm:$0xff]
      %v193 = vld [vmem:[%s172 + $0x58] sm:$0x3]
      %v194 = vld [vmem:[%s172 + $0x60] sm:$0xff]
      %v195 = vld [vmem:[%s172 + $0x68] sm:$0xff]
      %v196 = vld [vmem:[%s172 + $0x70] sm:$0x3]
      %v197 = vld [vmem:[%s172 + $0x78] sm:$0xff]
      %v198 = vld [vmem:[%s172 + $0x80] sm:$0xff]
      %v199 = vld [vmem:[%s172 + $0x88] sm:$0x3]
      %v200 = vld [vmem:[%s172 + $0x90] sm:$0xff]
      %v201 = vld [vmem:[%s172 + $0x98] sm:$0xff]
      %v202 = vld [vmem:[%s172 + $0xa0] sm:$0x3]
      %v203 = vld [vmem:[%s172 + $0xa8] sm:$0xff]
      %v204 = vld [vmem:[%s172 + $0xb0] sm:$0xff]
      %v205 = vld [vmem:[%s172 + $0xb8] sm:$0x3]
      %v206 = vld [vmem:[%s172 + $0xc0] sm:$0xff]
      %v207 = vld [vmem:[%s172 + $0xc8] sm:$0xff]
      %v208 = vld [vmem:[%s172 + $0xd0] sm:$0x3]
      %v209 = vld [vmem:[%s172 + $0xd8] sm:$0xff]
      %v210 = vld [vmem:[%s172 + $0xe0] sm:$0xff]
      %v211 = vld [vmem:[%s172 + $0xe8] sm:$0x3]
      %v212 = vld [vmem:[%s172 + $0xf0] sm:$0xff]
      %v213 = vld [vmem:[%s172 + $0xf8] sm:$0xff]
      %v214 = vld [vmem:[%s172 + $0x100] sm:$0x3]
      %v215 = vld [vmem:[%s172 + $0x108] sm:$0xff]
      %v216 = vld [vmem:[%s172 + $0x110] sm:$0xff]
      %v217 = vld [vmem:[%s172 + $0x118] sm:$0x3]
      %v218 = vld [vmem:[%s172 + $0x120] sm:$0xff]
      %v219 = vld [vmem:[%s172 + $0x128] sm:$0xff]
      %v220 = vld [vmem:[%s172 + $0x130] sm:$0x3]
      %v221 = vld [vmem:[%s172 + $0x138] sm:$0xff]
      %v222 = vld [vmem:[%s172 + $0x140] sm:$0xff]
      %v223 = vld [vmem:[%s172 + $0x148] sm:$0x3]
      %v224 = vld [vmem:[%s172 + $0x150] sm:$0xff]
      %v225 = vld [vmem:[%s172 + $0x158] sm:$0xff]
      %v226 = vld [vmem:[%s172 + $0x160] sm:$0x3]
      %v227 = vld [vmem:[%s172 + $0x168] sm:$0xff]
      %v228 = vld [vmem:[%s172 + $0x170] sm:$0xff]
      %v229 = vld [vmem:[%s172 + $0x178] sm:$0x3]
      %v230 = vld [vmem:[%s172 + $0x180] sm:$0xff]
      %v231 = vld [vmem:[%s172 + $0x188] sm:$0xff]
      %v232 = vld [vmem:[%s172 + $0x190] sm:$0x3]
      %v233 = vld [vmem:[%s172 + $0x198] sm:$0xff]
      %v234 = vld [vmem:[%s172 + $0x1a0] sm:$0xff]
      %v235 = vld [vmem:[%s172 + $0x1a8] sm:$0x3]
      %vm236 = vcmask 31744
      %237 = vst.msk [vmem:[#allocation2] sm:$0xff] %vm236, %v182
      %238 = vst.msk [vmem:[#allocation2 + $0x8] sm:$0xff] %vm236, %v183
      %239 = vst.msk [vmem:[#allocation2 + $0x10] sm:$0xff] %vm236, %v185
      %240 = vst.msk [vmem:[#allocation2 + $0x18] sm:$0xff] %vm236, %v186
      %241 = vst.msk [vmem:[#allocation2 + $0x20] sm:$0xff] %vm236, %v188
      %242 = vst.msk [vmem:[#allocation2 + $0x28] sm:$0xff] %vm236, %v189
      %243 = vst.msk [vmem:[#allocation2 + $0x30] sm:$0xff] %vm236, %v191
      %244 = vst.msk [vmem:[#allocation2 + $0x38] sm:$0xff] %vm236, %v192
      %245 = vst.msk [vmem:[#allocation2 + $0x40] sm:$0xff] %vm236, %v194
      %246 = vst.msk [vmem:[#allocation2 + $0x48] sm:$0xff] %vm236, %v195
      %247 = vst.msk [vmem:[#allocation2 + $0x50] sm:$0xff] %vm236, %v197
      %248 = vst.msk [vmem:[#allocation2 + $0x58] sm:$0xff] %vm236, %v198
      %249 = vst.msk [vmem:[#allocation2 + $0x60] sm:$0xff] %vm236, %v200
      %250 = vst.msk [vmem:[#allocation2 + $0x68] sm:$0xff] %vm236, %v201
      %251 = vst.msk [vmem:[#allocation2 + $0x70] sm:$0xff] %vm236, %v203
      %252 = vst.msk [vmem:[#allocation2 + $0x78] sm:$0xff] %vm236, %v204
      %253 = vst.msk [vmem:[#allocation2 + $0x80] sm:$0xff] %vm236, %v206
      %254 = vst.msk [vmem:[#allocation2 + $0x88] sm:$0xff] %vm236, %v207
      %255 = vst.msk [vmem:[#allocation2 + $0x90] sm:$0xff] %vm236, %v209
      %256 = vst.msk [vmem:[#allocation2 + $0x98] sm:$0xff] %vm236, %v210
      %257 = vst.msk [vmem:[#allocation2 + $0xa0] sm:$0xff] %vm236, %v212
      %258 = vst.msk [vmem:[#allocation2 + $0xa8] sm:$0xff] %vm236, %v213
      %259 = vst.msk [vmem:[#allocation2 + $0xb0] sm:$0xff] %vm236, %v215
      %260 = vst.msk [vmem:[#allocation2 + $0xb8] sm:$0xff] %vm236, %v216
      %261 = vst.msk [vmem:[#allocation2 + $0xc0] sm:$0xff] %vm236, %v218
      %262 = vst.msk [vmem:[#allocation2 + $0xc8] sm:$0xff] %vm236, %v219
      %263 = vst.msk [vmem:[#allocation2 + $0xd0] sm:$0xff] %vm236, %v221
      %264 = vst.msk [vmem:[#allocation2 + $0xd8] sm:$0xff] %vm236, %v222
      %265 = vst.msk [vmem:[#allocation2 + $0xe0] sm:$0xff] %vm236, %v224
      %266 = vst.msk [vmem:[#allocation2 + $0xe8] sm:$0xff] %vm236, %v225
      %267 = vst.msk [vmem:[#allocation2 + $0xf0] sm:$0xff] %vm236, %v227
      %268 = vst.msk [vmem:[#allocation2 + $0xf8] sm:$0xff] %vm236, %v228
      %vm317 = vcmask 1046528
      %v318 = vrot.slane %v182, 1
      %v319 = vrot.slane %v183, 1
      %v320 = vsel %vm317, %v318, %v319
      %v321 = vrot.slane %v184, 1
      %v322 = vsel %vm317, %v319, %v321
      %v323 = vrot.slane %v185, 1
      %v324 = vrot.slane %v186, 1
      %v325 = vsel %vm317, %v323, %v324
      %v326 = vrot.slane %v187, 1
      %v327 = vsel %vm317, %v324, %v326
      %v328 = vrot.slane %v188, 1
      %v329 = vrot.slane %v189, 1
      %v330 = vsel %vm317, %v328, %v329
      %v331 = vrot.slane %v190, 1
      %v332 = vsel %vm317, %v329, %v331
      %v333 = vrot.slane %v191, 1
      %v334 = vrot.slane %v192, 1
      %v335 = vsel %vm317, %v333, %v334
      %v336 = vrot.slane %v193, 1
      %v337 = vsel %vm317, %v334, %v336
      %v338 = vrot.slane %v194, 1
      %v339 = vrot.slane %v195, 1
      %v340 = vsel %vm317, %v338, %v339
      %v341 = vrot.slane %v196, 1
      %v342 = vsel %vm317, %v339, %v341
      %v343 = vrot.slane %v197, 1
      %v344 = vrot.slane %v198, 1
      %v345 = vsel %vm317, %v343, %v344
      %v346 = vrot.slane %v199, 1
      %v347 = vsel %vm317, %v344, %v346
      %v348 = vrot.slane %v200, 1
      %v349 = vrot.slane %v201, 1
      %v350 = vsel %vm317, %v348, %v349
      %v351 = vrot.slane %v202, 1
      %v352 = vsel %vm317, %v349, %v351
      %v353 = vrot.slane %v203, 1
      %v354 = vrot.slane %v204, 1
      %v355 = vsel %vm317, %v353, %v354
      %v356 = vrot.slane %v205, 1
      %v357 = vsel %vm317, %v354, %v356
      %v358 = vrot.slane %v206, 1
      %v359 = vrot.slane %v207, 1
      %v360 = vsel %vm317, %v358, %v359
      %v361 = vrot.slane %v208, 1
      %v362 = vsel %vm317, %v359, %v361
      %v363 = vrot.slane %v209, 1
      %v364 = vrot.slane %v210, 1
      %v365 = vsel %vm317, %v363, %v364
      %v366 = vrot.slane %v211, 1
      %v367 = vsel %vm317, %v364, %v366
      %v368 = vrot.slane %v212, 1
      %v369 = vrot.slane %v213, 1
      %v370 = vsel %vm317, %v368, %v369
      %v371 = vrot.slane %v214, 1
      %v372 = vsel %vm317, %v369, %v371
      %v373 = vrot.slane %v215, 1
      %v374 = vrot.slane %v216, 1
      %v375 = vsel %vm317, %v373, %v374
      %v376 = vrot.slane %v217, 1
      %v377 = vsel %vm317, %v374, %v376
      %v378 = vrot.slane %v218, 1
      %v379 = vrot.slane %v219, 1
      %v380 = vsel %vm317, %v378, %v379
      %v381 = vrot.slane %v220, 1
      %v382 = vsel %vm317, %v379, %v381
      %v383 = vrot.slane %v221, 1
      %v384 = vrot.slane %v222, 1
      %v385 = vsel %vm317, %v383, %v384
      %v386 = vrot.slane %v223, 1
      %v387 = vsel %vm317, %v384, %v386
      %v388 = vrot.slane %v224, 1
      %v389 = vrot.slane %v225, 1
      %v390 = vsel %vm317, %v388, %v389
      %v391 = vrot.slane %v226, 1
      %v392 = vsel %vm317, %v389, %v391
      %v393 = vrot.slane %v227, 1
      %v394 = vrot.slane %v228, 1
      %v395 = vsel %vm317, %v393, %v394
      %v396 = vrot.slane %v229, 1
      %v397 = vsel %vm317, %v394, %v396
      %398 = vrot.lane.b32.xlu0 %v320, 4
      %v399 = vpop.permute.xlu0 %398
      %400 = vrot.lane.b32.xlu0 %v322, 4
      %v401 = vpop.permute.xlu0 %400
      %402 = vrot.lane.b32.xlu0 %v325, 4
      %v403 = vpop.permute.xlu0 %402
      %404 = vrot.lane.b32.xlu0 %v327, 4
      %v405 = vpop.permute.xlu0 %404
      %406 = vrot.lane.b32.xlu0 %v330, 4
      %v407 = vpop.permute.xlu0 %406
      %408 = vrot.lane.b32.xlu0 %v332, 4
      %v409 = vpop.permute.xlu0 %408
      %410 = vrot.lane.b32.xlu0 %v335, 4
      %v411 = vpop.permute.xlu0 %410
      %412 = vrot.lane.b32.xlu0 %v337, 4
      %v413 = vpop.permute.xlu0 %412
      %414 = vrot.lane.b32.xlu0 %v340, 4
      %v415 = vpop.permute.xlu0 %414
      %416 = vrot.lane.b32.xlu0 %v342, 4
      %v417 = vpop.permute.xlu0 %416
      %418 = vrot.lane.b32.xlu0 %v345, 4
      %v419 = vpop.permute.xlu0 %418
      %420 = vrot.lane.b32.xlu0 %v347, 4
      %v421 = vpop.permute.xlu0 %420
      %422 = vrot.lane.b32.xlu0 %v350, 4
      %v423 = vpop.permute.xlu0 %422
      %424 = vrot.lane.b32.xlu0 %v352, 4
      %v425 = vpop.permute.xlu0 %424
      %426 = vrot.lane.b32.xlu0 %v355, 4
      %v427 = vpop.permute.xlu0 %426
      %428 = vrot.lane.b32.xlu0 %v357, 4
      %v429 = vpop.permute.xlu0 %428
      %430 = vrot.lane.b32.xlu0 %v360, 4
      %v431 = vpop.permute.xlu0 %430
      %432 = vrot.lane.b32.xlu0 %v362, 4
      %v433 = vpop.permute.xlu0 %432
      %434 = vrot.lane.b32.xlu0 %v365, 4
      %v435 = vpop.permute.xlu0 %434
      %436 = vrot.lane.b32.xlu0 %v367, 4
      %v437 = vpop.permute.xlu0 %436
      %438 = vrot.lane.b32.xlu0 %v370, 4
      %v439 = vpop.permute.xlu0 %438
      %440 = vrot.lane.b32.xlu0 %v372, 4
      %v441 = vpop.permute.xlu0 %440
      %442 = vrot.lane.b32.xlu0 %v375, 4
      %v443 = vpop.permute.xlu0 %442
      %444 = vrot.lane.b32.xlu0 %v377, 4
      %v445 = vpop.permute.xlu0 %444
      %446 = vrot.lane.b32.xlu0 %v380, 4
      %v447 = vpop.permute.xlu0 %446
      %448 = vrot.lane.b32.xlu0 %v382, 4
      %v449 = vpop.permute.xlu0 %448
      %450 = vrot.lane.b32.xlu0 %v385, 4
      %v451 = vpop.permute.xlu0 %450
      %452 = vrot.lane.b32.xlu0 %v387, 4
      %v453 = vpop.permute.xlu0 %452
      %454 = vrot.lane.b32.xlu0 %v390, 4
      %v455 = vpop.permute.xlu0 %454
      %456 = vrot.lane.b32.xlu0 %v392, 4
      %v457 = vpop.permute.xlu0 %456
      %458 = vrot.lane.b32.xlu0 %v395, 4
      %v459 = vpop.permute.xlu0 %458
      %460 = vrot.lane.b32.xlu0 %v397, 4
      %v461 = vpop.permute.xlu0 %460
      %vm494 = vcmask 64544
      %495 = vst.msk [vmem:[#allocation2] sm:$0xff] %vm494, %v399
      %496 = vst.msk [vmem:[#allocation2 + $0x8] sm:$0xff] %vm494, %v401
      %497 = vst.msk [vmem:[#allocation2 + $0x10] sm:$0xff] %vm494, %v403
      %498 = vst.msk [vmem:[#allocation2 + $0x18] sm:$0xff] %vm494, %v405
      %499 = vst.msk [vmem:[#allocation2 + $0x20] sm:$0xff] %vm494, %v407
      %500 = vst.msk [vmem:[#allocation2 + $0x28] sm:$0xff] %vm494, %v409
      %501 = vst.msk [vmem:[#allocation2 + $0x30] sm:$0xff] %vm494, %v411
      %502 = vst.msk [vmem:[#allocation2 + $0x38] sm:$0xff] %vm494, %v413
      %503 = vst.msk [vmem:[#allocation2 + $0x40] sm:$0xff] %vm494, %v415
      %504 = vst.msk [vmem:[#allocation2 + $0x48] sm:$0xff] %vm494, %v417
      %505 = vst.msk [vmem:[#allocation2 + $0x50] sm:$0xff] %vm494, %v419
      %506 = vst.msk [vmem:[#allocation2 + $0x58] sm:$0xff] %vm494, %v421
      %507 = vst.msk [vmem:[#allocation2 + $0x60] sm:$0xff] %vm494, %v423
      %508 = vst.msk [vmem:[#allocation2 + $0x68] sm:$0xff] %vm494, %v425
      %509 = vst.msk [vmem:[#allocation2 + $0x70] sm:$0xff] %vm494, %v427
      %510 = vst.msk [vmem:[#allocation2 + $0x78] sm:$0xff] %vm494, %v429
      %511 = vst.msk [vmem:[#allocation2 + $0x80] sm:$0xff] %vm494, %v431
      %512 = vst.msk [vmem:[#allocation2 + $0x88] sm:$0xff] %vm494, %v433
      %513 = vst.msk [vmem:[#allocation2 + $0x90] sm:$0xff] %vm494, %v435
      %514 = vst.msk [vmem:[#allocation2 + $0x98] sm:$0xff] %vm494, %v437
      %515 = vst.msk [vmem:[#allocation2 + $0xa0] sm:$0xff] %vm494, %v439
      %516 = vst.msk [vmem:[#allocation2 + $0xa8] sm:$0xff] %vm494, %v441
      %517 = vst.msk [vmem:[#allocation2 + $0xb0] sm:$0xff] %vm494, %v443
      %518 = vst.msk [vmem:[#allocation2 + $0xb8] sm:$0xff] %vm494, %v445
      %519 = vst.msk [vmem:[#allocation2 + $0xc0] sm:$0xff] %vm494, %v447
      %520 = vst.msk [vmem:[#allocation2 + $0xc8] sm:$0xff] %vm494, %v449
      %521 = vst.msk [vmem:[#allocation2 + $0xd0] sm:$0xff] %vm494, %v451
      %522 = vst.msk [vmem:[#allocation2 + $0xd8] sm:$0xff] %vm494, %v453
      %523 = vst.msk [vmem:[#allocation2 + $0xe0] sm:$0xff] %vm494, %v455
      %524 = vst.msk [vmem:[#allocation2 + $0xe8] sm:$0xff] %vm494, %v457
      %525 = vst.msk [vmem:[#allocation2 + $0xf0] sm:$0xff] %vm494, %v459
      %526 = vst.msk [vmem:[#allocation2 + $0xf8] sm:$0xff] %vm494, %v461
      %vm527 = vcmask 1045504
      %v528 = vrot.slane %v182, 2
      %v529 = vrot.slane %v183, 2
      %v530 = vsel %vm527, %v528, %v529
      %v531 = vrot.slane %v184, 2
      %v532 = vsel %vm527, %v529, %v531
      %v533 = vrot.slane %v185, 2
      %v534 = vrot.slane %v186, 2
      %v535 = vsel %vm527, %v533, %v534
      %v536 = vrot.slane %v187, 2
      %v537 = vsel %vm527, %v534, %v536
      %v538 = vrot.slane %v188, 2
      %v539 = vrot.slane %v189, 2
      %v540 = vsel %vm527, %v538, %v539
      %v541 = vrot.slane %v190, 2
      %v542 = vsel %vm527, %v539, %v541
      %v543 = vrot.slane %v191, 2
      %v544 = vrot.slane %v192, 2
      %v545 = vsel %vm527, %v543, %v544
      %v546 = vrot.slane %v193, 2
      %v547 = vsel %vm527, %v544, %v546
      %v548 = vrot.slane %v194, 2
      %v549 = vrot.slane %v195, 2
      %v550 = vsel %vm527, %v548, %v549
      %v551 = vrot.slane %v196, 2
      %v552 = vsel %vm527, %v549, %v551
      %v553 = vrot.slane %v197, 2
      %v554 = vrot.slane %v198, 2
      %v555 = vsel %vm527, %v553, %v554
      %v556 = vrot.slane %v199, 2
      %v557 = vsel %vm527, %v554, %v556
      %v558 = vrot.slane %v200, 2
      %v559 = vrot.slane %v201, 2
      %v560 = vsel %vm527, %v558, %v559
      %v561 = vrot.slane %v202, 2
      %v562 = vsel %vm527, %v559, %v561
      %v563 = vrot.slane %v203, 2
      %v564 = vrot.slane %v204, 2
      %v565 = vsel %vm527, %v563, %v564
      %v566 = vrot.slane %v205, 2
      %v567 = vsel %vm527, %v564, %v566
      %v568 = vrot.slane %v206, 2
      %v569 = vrot.slane %v207, 2
      %v570 = vsel %vm527, %v568, %v569
      %v571 = vrot.slane %v208, 2
      %v572 = vsel %vm527, %v569, %v571
      %v573 = vrot.slane %v209, 2
      %v574 = vrot.slane %v210, 2
      %v575 = vsel %vm527, %v573, %v574
      %v576 = vrot.slane %v211, 2
      %v577 = vsel %vm527, %v574, %v576
      %v578 = vrot.slane %v212, 2
      %v579 = vrot.slane %v213, 2
      %v580 = vsel %vm527, %v578, %v579
      %v581 = vrot.slane %v214, 2
      %v582 = vsel %vm527, %v579, %v581
      %v583 = vrot.slane %v215, 2
      %v584 = vrot.slane %v216, 2
      %v585 = vsel %vm527, %v583, %v584
      %v586 = vrot.slane %v217, 2
      %v587 = vsel %vm527, %v584, %v586
      %v588 = vrot.slane %v218, 2
      %v589 = vrot.slane %v219, 2
      %v590 = vsel %vm527, %v588, %v589
      %v591 = vrot.slane %v220, 2
      %v592 = vsel %vm527, %v589, %v591
      %v593 = vrot.slane %v221, 2
      %v594 = vrot.slane %v222, 2
      %v595 = vsel %vm527, %v593, %v594
      %v596 = vrot.slane %v223, 2
      %v597 = vsel %vm527, %v594, %v596
      %v598 = vrot.slane %v224, 2
      %v599 = vrot.slane %v225, 2
      %v600 = vsel %vm527, %v598, %v599
      %v601 = vrot.slane %v226, 2
      %v602 = vsel %vm527, %v599, %v601
      %v603 = vrot.slane %v227, 2
      %v604 = vrot.slane %v228, 2
      %v605 = vsel %vm527, %v603, %v604
      %v606 = vrot.slane %v229, 2
      %v607 = vsel %vm527, %v604, %v606
      %608 = vrot.lane.b32.xlu0 %v530, 8
      %v609 = vpop.permute.xlu0 %608
      %610 = vrot.lane.b32.xlu0 %v532, 8
      %v611 = vpop.permute.xlu0 %610
      %612 = vrot.lane.b32.xlu0 %v535, 8
      %v613 = vpop.permute.xlu0 %612
      %614 = vrot.lane.b32.xlu0 %v537, 8
      %v615 = vpop.permute.xlu0 %614
      %616 = vrot.lane.b32.xlu0 %v540, 8
      %v617 = vpop.permute.xlu0 %616
      %618 = vrot.lane.b32.xlu0 %v542, 8
      %v619 = vpop.permute.xlu0 %618
      %620 = vrot.lane.b32.xlu0 %v545, 8
      %v621 = vpop.permute.xlu0 %620
      %622 = vrot.lane.b32.xlu0 %v547, 8
      %v623 = vpop.permute.xlu0 %622
      %624 = vrot.lane.b32.xlu0 %v550, 8
      %v625 = vpop.permute.xlu0 %624
      %626 = vrot.lane.b32.xlu0 %v552, 8
      %v627 = vpop.permute.xlu0 %626
      %628 = vrot.lane.b32.xlu0 %v555, 8
      %v629 = vpop.permute.xlu0 %628
      %630 = vrot.lane.b32.xlu0 %v557, 8
      %v631 = vpop.permute.xlu0 %630
      %632 = vrot.lane.b32.xlu0 %v560, 8
      %v633 = vpop.permute.xlu0 %632
      %634 = vrot.lane.b32.xlu0 %v562, 8
      %v635 = vpop.permute.xlu0 %634
      %636 = vrot.lane.b32.xlu0 %v565, 8
      %v637 = vpop.permute.xlu0 %636
      %638 = vrot.lane.b32.xlu0 %v567, 8
      %v639 = vpop.permute.xlu0 %638
      %640 = vrot.lane.b32.xlu0 %v570, 8
      %v641 = vpop.permute.xlu0 %640
      %642 = vrot.lane.b32.xlu0 %v572, 8
      %v643 = vpop.permute.xlu0 %642
      %644 = vrot.lane.b32.xlu0 %v575, 8
      %v645 = vpop.permute.xlu0 %644
      %646 = vrot.lane.b32.xlu0 %v577, 8
      %v647 = vpop.permute.xlu0 %646
      %648 = vrot.lane.b32.xlu0 %v580, 8
      %v649 = vpop.permute.xlu0 %648
      %650 = vrot.lane.b32.xlu0 %v582, 8
      %v651 = vpop.permute.xlu0 %650
      %652 = vrot.lane.b32.xlu0 %v585, 8
      %v653 = vpop.permute.xlu0 %652
      %654 = vrot.lane.b32.xlu0 %v587, 8
      %v655 = vpop.permute.xlu0 %654
      %656 = vrot.lane.b32.xlu0 %v590, 8
      %v657 = vpop.permute.xlu0 %656
      %658 = vrot.lane.b32.xlu0 %v592, 8
      %v659 = vpop.permute.xlu0 %658
      %660 = vrot.lane.b32.xlu0 %v595, 8
      %v661 = vpop.permute.xlu0 %660
      %662 = vrot.lane.b32.xlu0 %v597, 8
      %v663 = vpop.permute.xlu0 %662
      %664 = vrot.lane.b32.xlu0 %v600, 8
      %v665 = vpop.permute.xlu0 %664
      %666 = vrot.lane.b32.xlu0 %v602, 8
      %v667 = vpop.permute.xlu0 %666
      %668 = vrot.lane.b32.xlu0 %v605, 8
      %v669 = vpop.permute.xlu0 %668
      %670 = vrot.lane.b32.xlu0 %v607, 8
      %v671 = vpop.permute.xlu0 %670
      %vm704 = vcmask 97344
      %705 = vst.msk [vmem:[#allocation2] sm:$0xff] %vm704, %v609
      %706 = vst.msk [vmem:[#allocation2 + $0x8] sm:$0xff] %vm704, %v611
      %707 = vst.msk [vmem:[#allocation2 + $0x10] sm:$0xff] %vm704, %v613
      %708 = vst.msk [vmem:[#allocation2 + $0x18] sm:$0xff] %vm704, %v615
      %709 = vst.msk [vmem:[#allocation2 + $0x20] sm:$0xff] %vm704, %v617
      %710 = vst.msk [vmem:[#allocation2 + $0x28] sm:$0xff] %vm704, %v619
      %711 = vst.msk [vmem:[#allocation2 + $0x30] sm:$0xff] %vm704, %v621
      %712 = vst.msk [vmem:[#allocation2 + $0x38] sm:$0xff] %vm704, %v623
      %713 = vst.msk [vmem:[#allocation2 + $0x40] sm:$0xff] %vm704, %v625
      %714 = vst.msk [vmem:[#allocation2 + $0x48] sm:$0xff] %vm704, %v627
      %715 = vst.msk [vmem:[#allocation2 + $0x50] sm:$0xff] %vm704, %v629
      %716 = vst.msk [vmem:[#allocation2 + $0x58] sm:$0xff] %vm704, %v631
      %717 = vst.msk [vmem:[#allocation2 + $0x60] sm:$0xff] %vm704, %v633
      %718 = vst.msk [vmem:[#allocation2 + $0x68] sm:$0xff] %vm704, %v635
      %719 = vst.msk [vmem:[#allocation2 + $0x70] sm:$0xff] %vm704, %v637
      %720 = vst.msk [vmem:[#allocation2 + $0x78] sm:$0xff] %vm704, %v639
      %721 = vst.msk [vmem:[#allocation2 + $0x80] sm:$0xff] %vm704, %v641
      %722 = vst.msk [vmem:[#allocation2 + $0x88] sm:$0xff] %vm704, %v643
      %723 = vst.msk [vmem:[#allocation2 + $0x90] sm:$0xff] %vm704, %v645
      %724 = vst.msk [vmem:[#allocation2 + $0x98] sm:$0xff] %vm704, %v647
      %725 = vst.msk [vmem:[#allocation2 + $0xa0] sm:$0xff] %vm704, %v649
      %726 = vst.msk [vmem:[#allocation2 + $0xa8] sm:$0xff] %vm704, %v651
      %727 = vst.msk [vmem:[#allocation2 + $0xb0] sm:$0xff] %vm704, %v653
      %728 = vst.msk [vmem:[#allocation2 + $0xb8] sm:$0xff] %vm704, %v655
      %729 = vst.msk [vmem:[#allocation2 + $0xc0] sm:$0xff] %vm704, %v657
      %730 = vst.msk [vmem:[#allocation2 + $0xc8] sm:$0xff] %vm704, %v659
      %731 = vst.msk [vmem:[#allocation2 + $0xd0] sm:$0xff] %vm704, %v661
      %732 = vst.msk [vmem:[#allocation2 + $0xd8] sm:$0xff] %vm704, %v663
      %733 = vst.msk [vmem:[#allocation2 + $0xe0] sm:$0xff] %vm704, %v665
      %734 = vst.msk [vmem:[#allocation2 + $0xe8] sm:$0xff] %vm704, %v667
      %735 = vst.msk [vmem:[#allocation2 + $0xf0] sm:$0xff] %vm704, %v669
      %736 = vst.msk [vmem:[#allocation2 + $0xf8] sm:$0xff] %vm704, %v671
      %739 = vrot.lane.b32.xlu0 %v185, 12
      %v740 = vpop.permute.xlu0 %739
      %741 = vrot.lane.b32.xlu0 %v186, 12
      %v742 = vpop.permute.xlu0 %741
      %743 = vrot.lane.b32.xlu0 %v188, 12
      %v744 = vpop.permute.xlu0 %743
      %745 = vrot.lane.b32.xlu0 %v189, 12
      %v746 = vpop.permute.xlu0 %745
      %747 = vrot.lane.b32.xlu0 %v191, 12
      %v748 = vpop.permute.xlu0 %747
      %749 = vrot.lane.b32.xlu0 %v192, 12
      %v750 = vpop.permute.xlu0 %749
      %751 = vrot.lane.b32.xlu0 %v194, 12
      %v752 = vpop.permute.xlu0 %751
      %753 = vrot.lane.b32.xlu0 %v195, 12
      %v754 = vpop.permute.xlu0 %753
      %755 = vrot.lane.b32.xlu0 %v197, 12
      %v756 = vpop.permute.xlu0 %755
      %757 = vrot.lane.b32.xlu0 %v198, 12
      %v758 = vpop.permute.xlu0 %757
      %759 = vrot.lane.b32.xlu0 %v200, 12
      %v760 = vpop.permute.xlu0 %759
      %761 = vrot.lane.b32.xlu0 %v201, 12
      %v762 = vpop.permute.xlu0 %761
      %763 = vrot.lane.b32.xlu0 %v203, 12
      %v764 = vpop.permute.xlu0 %763
      %765 = vrot.lane.b32.xlu0 %v204, 12
      %v766 = vpop.permute.xlu0 %765
      %767 = vrot.lane.b32.xlu0 %v206, 12
      %v768 = vpop.permute.xlu0 %767
      %769 = vrot.lane.b32.xlu0 %v207, 12
      %v770 = vpop.permute.xlu0 %769
      %771 = vrot.lane.b32.xlu0 %v209, 12
      %v772 = vpop.permute.xlu0 %771
      %773 = vrot.lane.b32.xlu0 %v210, 12
      %v774 = vpop.permute.xlu0 %773
      %775 = vrot.lane.b32.xlu0 %v212, 12
      %v776 = vpop.permute.xlu0 %775
      %777 = vrot.lane.b32.xlu0 %v213, 12
      %v778 = vpop.permute.xlu0 %777
      %779 = vrot.lane.b32.xlu0 %v215, 12
      %v780 = vpop.permute.xlu0 %779
      %781 = vrot.lane.b32.xlu0 %v216, 12
      %v782 = vpop.permute.xlu0 %781
      %783 = vrot.lane.b32.xlu0 %v218, 12
      %v784 = vpop.permute.xlu0 %783
      %785 = vrot.lane.b32.xlu0 %v219, 12
      %v786 = vpop.permute.xlu0 %785
      %787 = vrot.lane.b32.xlu0 %v221, 12
      %v788 = vpop.permute.xlu0 %787
      %789 = vrot.lane.b32.xlu0 %v222, 12
      %v790 = vpop.permute.xlu0 %789
      %791 = vrot.lane.b32.xlu0 %v224, 12
      %v792 = vpop.permute.xlu0 %791
      %793 = vrot.lane.b32.xlu0 %v225, 12
      %v794 = vpop.permute.xlu0 %793
      %795 = vrot.lane.b32.xlu0 %v227, 12
      %v796 = vpop.permute.xlu0 %795
      %797 = vrot.lane.b32.xlu0 %v228, 12
      %v798 = vpop.permute.xlu0 %797
      %799 = vrot.lane.b32.xlu0 %v230, 12
      %v800 = vpop.permute.xlu0 %799
      %801 = vrot.lane.b32.xlu0 %v231, 12
      %v802 = vpop.permute.xlu0 %801
      %vm835 = vcmask 130144
      %836 = vst.msk [vmem:[#allocation2] sm:$0xff] %vm835, %v740
      %837 = vst.msk [vmem:[#allocation2 + $0x8] sm:$0xff] %vm835, %v742
      %838 = vst.msk [vmem:[#allocation2 + $0x10] sm:$0xff] %vm835, %v744
      %839 = vst.msk [vmem:[#allocation2 + $0x18] sm:$0xff] %vm835, %v746
      %840 = vst.msk [vmem:[#allocation2 + $0x20] sm:$0xff] %vm835, %v748
      %841 = vst.msk [vmem:[#allocation2 + $0x28] sm:$0xff] %vm835, %v750
      %842 = vst.msk [vmem:[#allocation2 + $0x30] sm:$0xff] %vm835, %v752
      %843 = vst.msk [vmem:[#allocation2 + $0x38] sm:$0xff] %vm835, %v754
      %844 = vst.msk [vmem:[#allocation2 + $0x40] sm:$0xff] %vm835, %v756
      %845 = vst.msk [vmem:[#allocation2 + $0x48] sm:$0xff] %vm835, %v758
      %846 = vst.msk [vmem:[#allocation2 + $0x50] sm:$0xff] %vm835, %v760
      %847 = vst.msk [vmem:[#allocation2 + $0x58] sm:$0xff] %vm835, %v762
      %848 = vst.msk [vmem:[#allocation2 + $0x60] sm:$0xff] %vm835, %v764
      %849 = vst.msk [vmem:[#allocation2 + $0x68] sm:$0xff] %vm835, %v766
      %850 = vst.msk [vmem:[#allocation2 + $0x70] sm:$0xff] %vm835, %v768
      %851 = vst.msk [vmem:[#allocation2 + $0x78] sm:$0xff] %vm835, %v770
      %852 = vst.msk [vmem:[#allocation2 + $0x80] sm:$0xff] %vm835, %v772
      %853 = vst.msk [vmem:[#allocation2 + $0x88] sm:$0xff] %vm835, %v774
      %854 = vst.msk [vmem:[#allocation2 + $0x90] sm:$0xff] %vm835, %v776
      %855 = vst.msk [vmem:[#allocation2 + $0x98] sm:$0xff] %vm835, %v778
      %856 = vst.msk [vmem:[#allocation2 + $0xa0] sm:$0xff] %vm835, %v780
      %857 = vst.msk [vmem:[#allocation2 + $0xa8] sm:$0xff] %vm835, %v782
      %858 = vst.msk [vmem:[#allocation2 + $0xb0] sm:$0xff] %vm835, %v784
      %859 = vst.msk [vmem:[#allocation2 + $0xb8] sm:$0xff] %vm835, %v786
      %860 = vst.msk [vmem:[#allocation2 + $0xc0] sm:$0xff] %vm835, %v788
      %861 = vst.msk [vmem:[#allocation2 + $0xc8] sm:$0xff] %vm835, %v790
      %862 = vst.msk [vmem:[#allocation2 + $0xd0] sm:$0xff] %vm835, %v792
      %863 = vst.msk [vmem:[#allocation2 + $0xd8] sm:$0xff] %vm835, %v794
      %864 = vst.msk [vmem:[#allocation2 + $0xe0] sm:$0xff] %vm835, %v796
      %865 = vst.msk [vmem:[#allocation2 + $0xe8] sm:$0xff] %vm835, %v798
      %866 = vst.msk [vmem:[#allocation2 + $0xf0] sm:$0xff] %vm835, %v800
      %867 = vst.msk [vmem:[#allocation2 + $0xf8] sm:$0xff] %vm835, %v802
      %v869 = vrot.slane %v230, 1
      %v870 = vrot.slane %v231, 1
      %v871 = vsel %vm317, %v869, %v870
      %v872 = vrot.slane %v232, 1
      %v873 = vsel %vm317, %v870, %v872
      %874 = vrot.lane.b32.xlu0 %v325, 16
      %v875 = vpop.permute.xlu0 %874
      %876 = vrot.lane.b32.xlu0 %v327, 16
      %v877 = vpop.permute.xlu0 %876
      %878 = vrot.lane.b32.xlu0 %v330, 16
      %v879 = vpop.permute.xlu0 %878
      %880 = vrot.lane.b32.xlu0 %v332, 16
      %v881 = vpop.permute.xlu0 %880
      %882 = vrot.lane.b32.xlu0 %v335, 16
      %v883 = vpop.permute.xlu0 %882
      %884 = vrot.lane.b32.xlu0 %v337, 16
      %v885 = vpop.permute.xlu0 %884
      %886 = vrot.lane.b32.xlu0 %v340, 16
      %v887 = vpop.permute.xlu0 %886
      %888 = vrot.lane.b32.xlu0 %v342, 16
      %v889 = vpop.permute.xlu0 %888
      %890 = vrot.lane.b32.xlu0 %v345, 16
      %v891 = vpop.permute.xlu0 %890
      %892 = vrot.lane.b32.xlu0 %v347, 16
      %v893 = vpop.permute.xlu0 %892
      %894 = vrot.lane.b32.xlu0 %v350, 16
      %v895 = vpop.permute.xlu0 %894
      %896 = vrot.lane.b32.xlu0 %v352, 16
      %v897 = vpop.permute.xlu0 %896
      %898 = vrot.lane.b32.xlu0 %v355, 16
      %v899 = vpop.permute.xlu0 %898
      %900 = vrot.lane.b32.xlu0 %v357, 16
      %v901 = vpop.permute.xlu0 %900
      %902 = vrot.lane.b32.xlu0 %v360, 16
      %v903 = vpop.permute.xlu0 %902
      %904 = vrot.lane.b32.xlu0 %v362, 16
      %v905 = vpop.permute.xlu0 %904
      %906 = vrot.lane.b32.xlu0 %v365, 16
      %v907 = vpop.permute.xlu0 %906
      %908 = vrot.lane.b32.xlu0 %v367, 16
      %v909 = vpop.permute.xlu0 %908
      %910 = vrot.lane.b32.xlu0 %v370, 16
      %v911 = vpop.permute.xlu0 %910
      %912 = vrot.lane.b32.xlu0 %v372, 16
      %v913 = vpop.permute.xlu0 %912
      %914 = vrot.lane.b32.xlu0 %v375, 16
      %v915 = vpop.permute.xlu0 %914
      %916 = vrot.lane.b32.xlu0 %v377, 16
      %v917 = vpop.permute.xlu0 %916
      %918 = vrot.lane.b32.xlu0 %v380, 16
      %v919 = vpop.permute.xlu0 %918
      %920 = vrot.lane.b32.xlu0 %v382, 16
      %v921 = vpop.permute.xlu0 %920
      %922 = vrot.lane.b32.xlu0 %v385, 16
      %v923 = vpop.permute.xlu0 %922
      %924 = vrot.lane.b32.xlu0 %v387, 16
      %v925 = vpop.permute.xlu0 %924
      %926 = vrot.lane.b32.xlu0 %v390, 16
      %v927 = vpop.permute.xlu0 %926
      %928 = vrot.lane.b32.xlu0 %v392, 16
      %v929 = vpop.permute.xlu0 %928
      %930 = vrot.lane.b32.xlu0 %v395, 16
      %v931 = vpop.permute.xlu0 %930
      %932 = vrot.lane.b32.xlu0 %v397, 16
      %v933 = vpop.permute.xlu0 %932
      %934 = vrot.lane.b32.xlu0 %v871, 16
      %v935 = vpop.permute.xlu0 %934
      %936 = vrot.lane.b32.xlu0 %v873, 16
      %v937 = vpop.permute.xlu0 %936
      %vm970 = vcmask 162944
      %971 = vst.msk [vmem:[#allocation2] sm:$0xff] %vm970, %v875
      %972 = vst.msk [vmem:[#allocation2 + $0x8] sm:$0xff] %vm970, %v877
      %973 = vst.msk [vmem:[#allocation2 + $0x10] sm:$0xff] %vm970, %v879
      %974 = vst.msk [vmem:[#allocation2 + $0x18] sm:$0xff] %vm970, %v881
      %975 = vst.msk [vmem:[#allocation2 + $0x20] sm:$0xff] %vm970, %v883
      %976 = vst.msk [vmem:[#allocation2 + $0x28] sm:$0xff] %vm970, %v885
      %977 = vst.msk [vmem:[#allocation2 + $0x30] sm:$0xff] %vm970, %v887
      %978 = vst.msk [vmem:[#allocation2 + $0x38] sm:$0xff] %vm970, %v889
      %979 = vst.msk [vmem:[#allocation2 + $0x40] sm:$0xff] %vm970, %v891
      %980 = vst.msk [vmem:[#allocation2 + $0x48] sm:$0xff] %vm970, %v893
      %981 = vst.msk [vmem:[#allocation2 + $0x50] sm:$0xff] %vm970, %v895
      %982 = vst.msk [vmem:[#allocation2 + $0x58] sm:$0xff] %vm970, %v897
      %983 = vst.msk [vmem:[#allocation2 + $0x60] sm:$0xff] %vm970, %v899
      %984 = vst.msk [vmem:[#allocation2 + $0x68] sm:$0xff] %vm970, %v901
      %985 = vst.msk [vmem:[#allocation2 + $0x70] sm:$0xff] %vm970, %v903
      %986 = vst.msk [vmem:[#allocation2 + $0x78] sm:$0xff] %vm970, %v905
      %987 = vst.msk [vmem:[#allocation2 + $0x80] sm:$0xff] %vm970, %v907
      %988 = vst.msk [vmem:[#allocation2 + $0x88] sm:$0xff] %vm970, %v909
      %989 = vst.msk [vmem:[#allocation2 + $0x90] sm:$0xff] %vm970, %v911
      %990 = vst.msk [vmem:[#allocation2 + $0x98] sm:$0xff] %vm970, %v913
      %991 = vst.msk [vmem:[#allocation2 + $0xa0] sm:$0xff] %vm970, %v915
      %992 = vst.msk [vmem:[#allocation2 + $0xa8] sm:$0xff] %vm970, %v917
      %993 = vst.msk [vmem:[#allocation2 + $0xb0] sm:$0xff] %vm970, %v919
      %994 = vst.msk [vmem:[#allocation2 + $0xb8] sm:$0xff] %vm970, %v921
      %995 = vst.msk [vmem:[#allocation2 + $0xc0] sm:$0xff] %vm970, %v923
      %996 = vst.msk [vmem:[#allocation2 + $0xc8] sm:$0xff] %vm970, %v925
      %997 = vst.msk [vmem:[#allocation2 + $0xd0] sm:$0xff] %vm970, %v927
      %998 = vst.msk [vmem:[#allocation2 + $0xd8] sm:$0xff] %vm970, %v929
      %999 = vst.msk [vmem:[#allocation2 + $0xe0] sm:$0xff] %vm970, %v931
      %1000 = vst.msk [vmem:[#allocation2 + $0xe8] sm:$0xff] %vm970, %v933
      %1001 = vst.msk [vmem:[#allocation2 + $0xf0] sm:$0xff] %vm970, %v935
      %1002 = vst.msk [vmem:[#allocation2 + $0xf8] sm:$0xff] %vm970, %v937
      %v1003 = vrot.slane %v230, 2
      %v1004 = vrot.slane %v231, 2
      %v1005 = vsel %vm527, %v1003, %v1004
      %v1006 = vrot.slane %v232, 2
      %v1007 = vsel %vm527, %v1004, %v1006
      %1008 = vrot.lane.b32.xlu0 %v535, 20
      %v1009 = vpop.permute.xlu0 %1008
      %1010 = vrot.lane.b32.xlu0 %v537, 20
      %v1011 = vpop.permute.xlu0 %1010
      %1012 = vrot.lane.b32.xlu0 %v540, 20
      %v1013 = vpop.permute.xlu0 %1012
      %1014 = vrot.lane.b32.xlu0 %v542, 20
      %v1015 = vpop.permute.xlu0 %1014
      %1016 = vrot.lane.b32.xlu0 %v545, 20
      %v1017 = vpop.permute.xlu0 %1016
      %1018 = vrot.lane.b32.xlu0 %v547, 20
      %v1019 = vpop.permute.xlu0 %1018
      %1020 = vrot.lane.b32.xlu0 %v550, 20
      %v1021 = vpop.permute.xlu0 %1020
      %1022 = vrot.lane.b32.xlu0 %v552, 20
      %v1023 = vpop.permute.xlu0 %1022
      %1024 = vrot.lane.b32.xlu0 %v555, 20
      %v1025 = vpop.permute.xlu0 %1024
      %1026 = vrot.lane.b32.xlu0 %v557, 20
      %v1027 = vpop.permute.xlu0 %1026
      %1028 = vrot.lane.b32.xlu0 %v560, 20
      %v1029 = vpop.permute.xlu0 %1028
      %1030 = vrot.lane.b32.xlu0 %v562, 20
      %v1031 = vpop.permute.xlu0 %1030
      %1032 = vrot.lane.b32.xlu0 %v565, 20
      %v1033 = vpop.permute.xlu0 %1032
      %1034 = vrot.lane.b32.xlu0 %v567, 20
      %v1035 = vpop.permute.xlu0 %1034
      %1036 = vrot.lane.b32.xlu0 %v570, 20
      %v1037 = vpop.permute.xlu0 %1036
      %1038 = vrot.lane.b32.xlu0 %v572, 20
      %v1039 = vpop.permute.xlu0 %1038
      %1040 = vrot.lane.b32.xlu0 %v575, 20
      %v1041 = vpop.permute.xlu0 %1040
      %1042 = vrot.lane.b32.xlu0 %v577, 20
      %v1043 = vpop.permute.xlu0 %1042
      %1044 = vrot.lane.b32.xlu0 %v580, 20
      %v1045 = vpop.permute.xlu0 %1044
      %1046 = vrot.lane.b32.xlu0 %v582, 20
      %v1047 = vpop.permute.xlu0 %1046
      %1048 = vrot.lane.b32.xlu0 %v585, 20
      %v1049 = vpop.permute.xlu0 %1048
      %1050 = vrot.lane.b32.xlu0 %v587, 20
      %v1051 = vpop.permute.xlu0 %1050
      %1052 = vrot.lane.b32.xlu0 %v590, 20
      %v1053 = vpop.permute.xlu0 %1052
      %1054 = vrot.lane.b32.xlu0 %v592, 20
      %v1055 = vpop.permute.xlu0 %1054
      %1056 = vrot.lane.b32.xlu0 %v595, 20
      %v1057 = vpop.permute.xlu0 %1056
      %1058 = vrot.lane.b32.xlu0 %v597, 20
      %v1059 = vpop.permute.xlu0 %1058
      %1060 = vrot.lane.b32.xlu0 %v600, 20
      %v1061 = vpop.permute.xlu0 %1060
      %1062 = vrot.lane.b32.xlu0 %v602, 20
      %v1063 = vpop.permute.xlu0 %1062
      %1064 = vrot.lane.b32.xlu0 %v605, 20
      %v1065 = vpop.permute.xlu0 %1064
      %1066 = vrot.lane.b32.xlu0 %v607, 20
      %v1067 = vpop.permute.xlu0 %1066
      %1068 = vrot.lane.b32.xlu0 %v1005, 20
      %v1069 = vpop.permute.xlu0 %1068
      %1070 = vrot.lane.b32.xlu0 %v1007, 20
      %v1071 = vpop.permute.xlu0 %1070
      %vm1104 = vcmask 195744
      %1105 = vst.msk [vmem:[#allocation2] sm:$0xff] %vm1104, %v1009
      %1106 = vst.msk [vmem:[#allocation2 + $0x8] sm:$0xff] %vm1104, %v1011
      %1107 = vst.msk [vmem:[#allocation2 + $0x10] sm:$0xff] %vm1104, %v1013
      %1108 = vst.msk [vmem:[#allocation2 + $0x18] sm:$0xff] %vm1104, %v1015
      %1109 = vst.msk [vmem:[#allocation2 + $0x20] sm:$0xff] %vm1104, %v1017
      %1110 = vst.msk [vmem:[#allocation2 + $0x28] sm:$0xff] %vm1104, %v1019
      %1111 = vst.msk [vmem:[#allocation2 + $0x30] sm:$0xff] %vm1104, %v1021
      %1112 = vst.msk [vmem:[#allocation2 + $0x38] sm:$0xff] %vm1104, %v1023
      %1113 = vst.msk [vmem:[#allocation2 + $0x40] sm:$0xff] %vm1104, %v1025
      %1114 = vst.msk [vmem:[#allocation2 + $0x48] sm:$0xff] %vm1104, %v1027
      %1115 = vst.msk [vmem:[#allocation2 + $0x50] sm:$0xff] %vm1104, %v1029
      %1116 = vst.msk [vmem:[#allocation2 + $0x58] sm:$0xff] %vm1104, %v1031
      %1117 = vst.msk [vmem:[#allocation2 + $0x60] sm:$0xff] %vm1104, %v1033
      %1118 = vst.msk [vmem:[#allocation2 + $0x68] sm:$0xff] %vm1104, %v1035
      %1119 = vst.msk [vmem:[#allocation2 + $0x70] sm:$0xff] %vm1104, %v1037
      %1120 = vst.msk [vmem:[#allocation2 + $0x78] sm:$0xff] %vm1104, %v1039
      %1121 = vst.msk [vmem:[#allocation2 + $0x80] sm:$0xff] %vm1104, %v1041
      %1122 = vst.msk [vmem:[#allocation2 + $0x88] sm:$0xff] %vm1104, %v1043
      %1123 = vst.msk [vmem:[#allocation2 + $0x90] sm:$0xff] %vm1104, %v1045
      %1124 = vst.msk [vmem:[#allocation2 + $0x98] sm:$0xff] %vm1104, %v1047
      %1125 = vst.msk [vmem:[#allocation2 + $0xa0] sm:$0xff] %vm1104, %v1049
      %1126 = vst.msk [vmem:[#allocation2 + $0xa8] sm:$0xff] %vm1104, %v1051
      %1127 = vst.msk [vmem:[#allocation2 + $0xb0] sm:$0xff] %vm1104, %v1053
      %1128 = vst.msk [vmem:[#allocation2 + $0xb8] sm:$0xff] %vm1104, %v1055
      %1129 = vst.msk [vmem:[#allocation2 + $0xc0] sm:$0xff] %vm1104, %v1057
      %1130 = vst.msk [vmem:[#allocation2 + $0xc8] sm:$0xff] %vm1104, %v1059
      %1131 = vst.msk [vmem:[#allocation2 + $0xd0] sm:$0xff] %vm1104, %v1061
      %1132 = vst.msk [vmem:[#allocation2 + $0xd8] sm:$0xff] %vm1104, %v1063
      %1133 = vst.msk [vmem:[#allocation2 + $0xe0] sm:$0xff] %vm1104, %v1065
      %1134 = vst.msk [vmem:[#allocation2 + $0xe8] sm:$0xff] %vm1104, %v1067
      %1135 = vst.msk [vmem:[#allocation2 + $0xf0] sm:$0xff] %vm1104, %v1069
      %1136 = vst.msk [vmem:[#allocation2 + $0xf8] sm:$0xff] %vm1104, %v1071
      %1139 = vrot.lane.b32.xlu0 %v188, 24
      %v1140 = vpop.permute.xlu0 %1139
      %1141 = vrot.lane.b32.xlu0 %v189, 24
      %v1142 = vpop.permute.xlu0 %1141
      %1143 = vrot.lane.b32.xlu0 %v191, 24
      %v1144 = vpop.permute.xlu0 %1143
      %1145 = vrot.lane.b32.xlu0 %v192, 24
      %v1146 = vpop.permute.xlu0 %1145
      %1147 = vrot.lane.b32.xlu0 %v194, 24
      %v1148 = vpop.permute.xlu0 %1147
      %1149 = vrot.lane.b32.xlu0 %v195, 24
      %v1150 = vpop.permute.xlu0 %1149
      %1151 = vrot.lane.b32.xlu0 %v197, 24
      %v1152 = vpop.permute.xlu0 %1151
      %1153 = vrot.lane.b32.xlu0 %v198, 24
      %v1154 = vpop.permute.xlu0 %1153
      %1155 = vrot.lane.b32.xlu0 %v200, 24
      %v1156 = vpop.permute.xlu0 %1155
      %1157 = vrot.lane.b32.xlu0 %v201, 24
      %v1158 = vpop.permute.xlu0 %1157
      %1159 = vrot.lane.b32.xlu0 %v203, 24
      %v1160 = vpop.permute.xlu0 %1159
      %1161 = vrot.lane.b32.xlu0 %v204, 24
      %v1162 = vpop.permute.xlu0 %1161
      %1163 = vrot.lane.b32.xlu0 %v206, 24
      %v1164 = vpop.permute.xlu0 %1163
      %1165 = vrot.lane.b32.xlu0 %v207, 24
      %v1166 = vpop.permute.xlu0 %1165
      %1167 = vrot.lane.b32.xlu0 %v209, 24
      %v1168 = vpop.permute.xlu0 %1167
      %1169 = vrot.lane.b32.xlu0 %v210, 24
      %v1170 = vpop.permute.xlu0 %1169
      %1171 = vrot.lane.b32.xlu0 %v212, 24
      %v1172 = vpop.permute.xlu0 %1171
      %1173 = vrot.lane.b32.xlu0 %v213, 24
      %v1174 = vpop.permute.xlu0 %1173
      %1175 = vrot.lane.b32.xlu0 %v215, 24
      %v1176 = vpop.permute.xlu0 %1175
      %1177 = vrot.lane.b32.xlu0 %v216, 24
      %v1178 = vpop.permute.xlu0 %1177
      %1179 = vrot.lane.b32.xlu0 %v218, 24
      %v1180 = vpop.permute.xlu0 %1179
      %1181 = vrot.lane.b32.xlu0 %v219, 24
      %v1182 = vpop.permute.xlu0 %1181
      %1183 = vrot.lane.b32.xlu0 %v221, 24
      %v1184 = vpop.permute.xlu0 %1183
      %1185 = vrot.lane.b32.xlu0 %v222, 24
      %v1186 = vpop.permute.xlu0 %1185
      %1187 = vrot.lane.b32.xlu0 %v224, 24
      %v1188 = vpop.permute.xlu0 %1187
      %1189 = vrot.lane.b32.xlu0 %v225, 24
      %v1190 = vpop.permute.xlu0 %1189
      %1191 = vrot.lane.b32.xlu0 %v227, 24
      %v1192 = vpop.permute.xlu0 %1191
      %1193 = vrot.lane.b32.xlu0 %v228, 24
      %v1194 = vpop.permute.xlu0 %1193
      %1195 = vrot.lane.b32.xlu0 %v230, 24
      %v1196 = vpop.permute.xlu0 %1195
      %1197 = vrot.lane.b32.xlu0 %v231, 24
      %v1198 = vpop.permute.xlu0 %1197
      %1199 = vrot.lane.b32.xlu0 %v233, 24
      %v1200 = vpop.permute.xlu0 %1199
      %1201 = vrot.lane.b32.xlu0 %v234, 24
      %v1202 = vpop.permute.xlu0 %1201
      %vm1235 = vcmask 228544
      %1236 = vst.msk [vmem:[#allocation2] sm:$0xff] %vm1235, %v1140
      %1237 = vst.msk [vmem:[#allocation2 + $0x8] sm:$0xff] %vm1235, %v1142
      %1238 = vst.msk [vmem:[#allocation2 + $0x10] sm:$0xff] %vm1235, %v1144
      %1239 = vst.msk [vmem:[#allocation2 + $0x18] sm:$0xff] %vm1235, %v1146
      %1240 = vst.msk [vmem:[#allocation2 + $0x20] sm:$0xff] %vm1235, %v1148
      %1241 = vst.msk [vmem:[#allocation2 + $0x28] sm:$0xff] %vm1235, %v1150
      %1242 = vst.msk [vmem:[#allocation2 + $0x30] sm:$0xff] %vm1235, %v1152
      %1243 = vst.msk [vmem:[#allocation2 + $0x38] sm:$0xff] %vm1235, %v1154
      %1244 = vst.msk [vmem:[#allocation2 + $0x40] sm:$0xff] %vm1235, %v1156
      %1245 = vst.msk [vmem:[#allocation2 + $0x48] sm:$0xff] %vm1235, %v1158
      %1246 = vst.msk [vmem:[#allocation2 + $0x50] sm:$0xff] %vm1235, %v1160
      %1247 = vst.msk [vmem:[#allocation2 + $0x58] sm:$0xff] %vm1235, %v1162
      %1248 = vst.msk [vmem:[#allocation2 + $0x60] sm:$0xff] %vm1235, %v1164
      %1249 = vst.msk [vmem:[#allocation2 + $0x68] sm:$0xff] %vm1235, %v1166
      %1250 = vst.msk [vmem:[#allocation2 + $0x70] sm:$0xff] %vm1235, %v1168
      %1251 = vst.msk [vmem:[#allocation2 + $0x78] sm:$0xff] %vm1235, %v1170
      %1252 = vst.msk [vmem:[#allocation2 + $0x80] sm:$0xff] %vm1235, %v1172
      %1253 = vst.msk [vmem:[#allocation2 + $0x88] sm:$0xff] %vm1235, %v1174
      %1254 = vst.msk [vmem:[#allocation2 + $0x90] sm:$0xff] %vm1235, %v1176
      %1255 = vst.msk [vmem:[#allocation2 + $0x98] sm:$0xff] %vm1235, %v1178
      %1256 = vst.msk [vmem:[#allocation2 + $0xa0] sm:$0xff] %vm1235, %v1180
      %1257 = vst.msk [vmem:[#allocation2 + $0xa8] sm:$0xff] %vm1235, %v1182
      %1258 = vst.msk [vmem:[#allocation2 + $0xb0] sm:$0xff] %vm1235, %v1184
      %1259 = vst.msk [vmem:[#allocation2 + $0xb8] sm:$0xff] %vm1235, %v1186
      %1260 = vst.msk [vmem:[#allocation2 + $0xc0] sm:$0xff] %vm1235, %v1188
      %1261 = vst.msk [vmem:[#allocation2 + $0xc8] sm:$0xff] %vm1235, %v1190
      %1262 = vst.msk [vmem:[#allocation2 + $0xd0] sm:$0xff] %vm1235, %v1192
      %1263 = vst.msk [vmem:[#allocation2 + $0xd8] sm:$0xff] %vm1235, %v1194
      %1264 = vst.msk [vmem:[#allocation2 + $0xe0] sm:$0xff] %vm1235, %v1196
      %1265 = vst.msk [vmem:[#allocation2 + $0xe8] sm:$0xff] %vm1235, %v1198
      %1266 = vst.msk [vmem:[#allocation2 + $0xf0] sm:$0xff] %vm1235, %v1200
      %1267 = vst.msk [vmem:[#allocation2 + $0xf8] sm:$0xff] %vm1235, %v1202
      %v1269 = vrot.slane %v233, 1
      %v1270 = vrot.slane %v234, 1
      %v1271 = vsel %vm317, %v1269, %v1270
      %v1272 = vrot.slane %v235, 1
      %v1273 = vsel %vm317, %v1270, %v1272
      %1274 = vrot.lane.b32.xlu0 %v330, 28
      %v1275 = vpop.permute.xlu0 %1274
      %1276 = vrot.lane.b32.xlu0 %v332, 28
      %v1277 = vpop.permute.xlu0 %1276
      %1278 = vrot.lane.b32.xlu0 %v335, 28
      %v1279 = vpop.permute.xlu0 %1278
      %1280 = vrot.lane.b32.xlu0 %v337, 28
      %v1281 = vpop.permute.xlu0 %1280
      %1282 = vrot.lane.b32.xlu0 %v340, 28
      %v1283 = vpop.permute.xlu0 %1282
      %1284 = vrot.lane.b32.xlu0 %v342, 28
      %v1285 = vpop.permute.xlu0 %1284
      %1286 = vrot.lane.b32.xlu0 %v345, 28
      %v1287 = vpop.permute.xlu0 %1286
      %1288 = vrot.lane.b32.xlu0 %v347, 28
      %v1289 = vpop.permute.xlu0 %1288
      %1290 = vrot.lane.b32.xlu0 %v350, 28
      %v1291 = vpop.permute.xlu0 %1290
      %1292 = vrot.lane.b32.xlu0 %v352, 28
      %v1293 = vpop.permute.xlu0 %1292
      %1294 = vrot.lane.b32.xlu0 %v355, 28
      %v1295 = vpop.permute.xlu0 %1294
      %1296 = vrot.lane.b32.xlu0 %v357, 28
      %v1297 = vpop.permute.xlu0 %1296
      %1298 = vrot.lane.b32.xlu0 %v360, 28
      %v1299 = vpop.permute.xlu0 %1298
      %1300 = vrot.lane.b32.xlu0 %v362, 28
      %v1301 = vpop.permute.xlu0 %1300
      %1302 = vrot.lane.b32.xlu0 %v365, 28
      %v1303 = vpop.permute.xlu0 %1302
      %1304 = vrot.lane.b32.xlu0 %v367, 28
      %v1305 = vpop.permute.xlu0 %1304
      %1306 = vrot.lane.b32.xlu0 %v370, 28
      %v1307 = vpop.permute.xlu0 %1306
      %1308 = vrot.lane.b32.xlu0 %v372, 28
      %v1309 = vpop.permute.xlu0 %1308
      %1310 = vrot.lane.b32.xlu0 %v375, 28
      %v1311 = vpop.permute.xlu0 %1310
      %1312 = vrot.lane.b32.xlu0 %v377, 28
      %v1313 = vpop.permute.xlu0 %1312
      %1314 = vrot.lane.b32.xlu0 %v380, 28
      %v1315 = vpop.permute.xlu0 %1314
      %1316 = vrot.lane.b32.xlu0 %v382, 28
      %v1317 = vpop.permute.xlu0 %1316
      %1318 = vrot.lane.b32.xlu0 %v385, 28
      %v1319 = vpop.permute.xlu0 %1318
      %1320 = vrot.lane.b32.xlu0 %v387, 28
      %v1321 = vpop.permute.xlu0 %1320
      %1322 = vrot.lane.b32.xlu0 %v390, 28
      %v1323 = vpop.permute.xlu0 %1322
      %1324 = vrot.lane.b32.xlu0 %v392, 28
      %v1325 = vpop.permute.xlu0 %1324
      %1326 = vrot.lane.b32.xlu0 %v395, 28
      %v1327 = vpop.permute.xlu0 %1326
      %1328 = vrot.lane.b32.xlu0 %v397, 28
      %v1329 = vpop.permute.xlu0 %1328
      %1330 = vrot.lane.b32.xlu0 %v871, 28
      %v1331 = vpop.permute.xlu0 %1330
      %1332 = vrot.lane.b32.xlu0 %v873, 28
      %v1333 = vpop.permute.xlu0 %1332
      %1334 = vrot.lane.b32.xlu0 %v1271, 28
      %v1335 = vpop.permute.xlu0 %1334
      %1336 = vrot.lane.b32.xlu0 %v1273, 28
      %v1337 = vpop.permute.xlu0 %1336
      %vm1370 = vcmask 261344
      %1371 = vst.msk [vmem:[#allocation2] sm:$0xff] %vm1370, %v1275
      %1372 = vst.msk [vmem:[#allocation2 + $0x8] sm:$0xff] %vm1370, %v1277
      %1373 = vst.msk [vmem:[#allocation2 + $0x10] sm:$0xff] %vm1370, %v1279
      %1374 = vst.msk [vmem:[#allocation2 + $0x18] sm:$0xff] %vm1370, %v1281
      %1375 = vst.msk [vmem:[#allocation2 + $0x20] sm:$0xff] %vm1370, %v1283
      %1376 = vst.msk [vmem:[#allocation2 + $0x28] sm:$0xff] %vm1370, %v1285
      %1377 = vst.msk [vmem:[#allocation2 + $0x30] sm:$0xff] %vm1370, %v1287
      %1378 = vst.msk [vmem:[#allocation2 + $0x38] sm:$0xff] %vm1370, %v1289
      %1379 = vst.msk [vmem:[#allocation2 + $0x40] sm:$0xff] %vm1370, %v1291
      %1380 = vst.msk [vmem:[#allocation2 + $0x48] sm:$0xff] %vm1370, %v1293
      %1381 = vst.msk [vmem:[#allocation2 + $0x50] sm:$0xff] %vm1370, %v1295
      %1382 = vst.msk [vmem:[#allocation2 + $0x58] sm:$0xff] %vm1370, %v1297
      %1383 = vst.msk [vmem:[#allocation2 + $0x60] sm:$0xff] %vm1370, %v1299
      %1384 = vst.msk [vmem:[#allocation2 + $0x68] sm:$0xff] %vm1370, %v1301
      %1385 = vst.msk [vmem:[#allocation2 + $0x70] sm:$0xff] %vm1370, %v1303
      %1386 = vst.msk [vmem:[#allocation2 + $0x78] sm:$0xff] %vm1370, %v1305
      %1387 = vst.msk [vmem:[#allocation2 + $0x80] sm:$0xff] %vm1370, %v1307
      %1388 = vst.msk [vmem:[#allocation2 + $0x88] sm:$0xff] %vm1370, %v1309
      %1389 = vst.msk [vmem:[#allocation2 + $0x90] sm:$0xff] %vm1370, %v1311
      %1390 = vst.msk [vmem:[#allocation2 + $0x98] sm:$0xff] %vm1370, %v1313
      %1391 = vst.msk [vmem:[#allocation2 + $0xa0] sm:$0xff] %vm1370, %v1315
      %1392 = vst.msk [vmem:[#allocation2 + $0xa8] sm:$0xff] %vm1370, %v1317
      %1393 = vst.msk [vmem:[#allocation2 + $0xb0] sm:$0xff] %vm1370, %v1319
      %1394 = vst.msk [vmem:[#allocation2 + $0xb8] sm:$0xff] %vm1370, %v1321
      %1395 = vst.msk [vmem:[#allocation2 + $0xc0] sm:$0xff] %vm1370, %v1323
      %1396 = vst.msk [vmem:[#allocation2 + $0xc8] sm:$0xff] %vm1370, %v1325
      %1397 = vst.msk [vmem:[#allocation2 + $0xd0] sm:$0xff] %vm1370, %v1327
      %1398 = vst.msk [vmem:[#allocation2 + $0xd8] sm:$0xff] %vm1370, %v1329
      %1399 = vst.msk [vmem:[#allocation2 + $0xe0] sm:$0xff] %vm1370, %v1331
      %1400 = vst.msk [vmem:[#allocation2 + $0xe8] sm:$0xff] %vm1370, %v1333
      %1401 = vst.msk [vmem:[#allocation2 + $0xf0] sm:$0xff] %vm1370, %v1335
      %1402 = vst.msk [vmem:[#allocation2 + $0xf8] sm:$0xff] %vm1370, %v1337
      %v1403 = vrot.slane %v233, 2
      %v1404 = vrot.slane %v234, 2
      %v1405 = vsel %vm527, %v1403, %v1404
      %v1406 = vrot.slane %v235, 2
      %v1407 = vsel %vm527, %v1404, %v1406
      %1408 = vrot.lane.b32.xlu0 %v540, 32
      %v1409 = vpop.permute.xlu0 %1408
      %1410 = vrot.lane.b32.xlu0 %v542, 32
      %v1411 = vpop.permute.xlu0 %1410
      %1412 = vrot.lane.b32.xlu0 %v545, 32
      %v1413 = vpop.permute.xlu0 %1412
      %1414 = vrot.lane.b32.xlu0 %v547, 32
      %v1415 = vpop.permute.xlu0 %1414
      %1416 = vrot.lane.b32.xlu0 %v550, 32
      %v1417 = vpop.permute.xlu0 %1416
      %1418 = vrot.lane.b32.xlu0 %v552, 32
      %v1419 = vpop.permute.xlu0 %1418
      %1420 = vrot.lane.b32.xlu0 %v555, 32
      %v1421 = vpop.permute.xlu0 %1420
      %1422 = vrot.lane.b32.xlu0 %v557, 32
      %v1423 = vpop.permute.xlu0 %1422
      %1424 = vrot.lane.b32.xlu0 %v560, 32
      %v1425 = vpop.permute.xlu0 %1424
      %1426 = vrot.lane.b32.xlu0 %v562, 32
      %v1427 = vpop.permute.xlu0 %1426
      %1428 = vrot.lane.b32.xlu0 %v565, 32
      %v1429 = vpop.permute.xlu0 %1428
      %1430 = vrot.lane.b32.xlu0 %v567, 32
      %v1431 = vpop.permute.xlu0 %1430
      %1432 = vrot.lane.b32.xlu0 %v570, 32
      %v1433 = vpop.permute.xlu0 %1432
      %1434 = vrot.lane.b32.xlu0 %v572, 32
      %v1435 = vpop.permute.xlu0 %1434
      %1436 = vrot.lane.b32.xlu0 %v575, 32
      %v1437 = vpop.permute.xlu0 %1436
      %1438 = vrot.lane.b32.xlu0 %v577, 32
      %v1439 = vpop.permute.xlu0 %1438
      %1440 = vrot.lane.b32.xlu0 %v580, 32
      %v1441 = vpop.permute.xlu0 %1440
      %1442 = vrot.lane.b32.xlu0 %v582, 32
      %v1443 = vpop.permute.xlu0 %1442
      %1444 = vrot.lane.b32.xlu0 %v585, 32
      %v1445 = vpop.permute.xlu0 %1444
      %1446 = vrot.lane.b32.xlu0 %v587, 32
      %v1447 = vpop.permute.xlu0 %1446
      %1448 = vrot.lane.b32.xlu0 %v590, 32
      %v1449 = vpop.permute.xlu0 %1448
      %1450 = vrot.lane.b32.xlu0 %v592, 32
      %v1451 = vpop.permute.xlu0 %1450
      %1452 = vrot.lane.b32.xlu0 %v595, 32
      %v1453 = vpop.permute.xlu0 %1452
      %1454 = vrot.lane.b32.xlu0 %v597, 32
      %v1455 = vpop.permute.xlu0 %1454
      %1456 = vrot.lane.b32.xlu0 %v600, 32
      %v1457 = vpop.permute.xlu0 %1456
      %1458 = vrot.lane.b32.xlu0 %v602, 32
      %v1459 = vpop.permute.xlu0 %1458
      %1460 = vrot.lane.b32.xlu0 %v605, 32
      %v1461 = vpop.permute.xlu0 %1460
      %1462 = vrot.lane.b32.xlu0 %v607, 32
      %v1463 = vpop.permute.xlu0 %1462
      %1464 = vrot.lane.b32.xlu0 %v1005, 32
      %v1465 = vpop.permute.xlu0 %1464
      %1466 = vrot.lane.b32.xlu0 %v1007, 32
      %v1467 = vpop.permute.xlu0 %1466
      %1468 = vrot.lane.b32.xlu0 %v1405, 32
      %v1469 = vpop.permute.xlu0 %1468
      %1470 = vrot.lane.b32.xlu0 %v1407, 32
      %v1471 = vpop.permute.xlu0 %1470
      %vm1504 = vcmask 294144
      %1505 = vst.msk [vmem:[#allocation2] sm:$0xff] %vm1504, %v1409
      %1506 = vst.msk [vmem:[#allocation2 + $0x8] sm:$0xff] %vm1504, %v1411
      %1507 = vst.msk [vmem:[#allocation2 + $0x10] sm:$0xff] %vm1504, %v1413
      %1508 = vst.msk [vmem:[#allocation2 + $0x18] sm:$0xff] %vm1504, %v1415
      %1509 = vst.msk [vmem:[#allocation2 + $0x20] sm:$0xff] %vm1504, %v1417
      %1510 = vst.msk [vmem:[#allocation2 + $0x28] sm:$0xff] %vm1504, %v1419
      %1511 = vst.msk [vmem:[#allocation2 + $0x30] sm:$0xff] %vm1504, %v1421
      %1512 = vst.msk [vmem:[#allocation2 + $0x38] sm:$0xff] %vm1504, %v1423
      %1513 = vst.msk [vmem:[#allocation2 + $0x40] sm:$0xff] %vm1504, %v1425
      %1514 = vst.msk [vmem:[#allocation2 + $0x48] sm:$0xff] %vm1504, %v1427
      %1515 = vst.msk [vmem:[#allocation2 + $0x50] sm:$0xff] %vm1504, %v1429
      %1516 = vst.msk [vmem:[#allocation2 + $0x58] sm:$0xff] %vm1504, %v1431
      %1517 = vst.msk [vmem:[#allocation2 + $0x60] sm:$0xff] %vm1504, %v1433
      %1518 = vst.msk [vmem:[#allocation2 + $0x68] sm:$0xff] %vm1504, %v1435
      %1519 = vst.msk [vmem:[#allocation2 + $0x70] sm:$0xff] %vm1504, %v1437
      %1520 = vst.msk [vmem:[#allocation2 + $0x78] sm:$0xff] %vm1504, %v1439
      %1521 = vst.msk [vmem:[#allocation2 + $0x80] sm:$0xff] %vm1504, %v1441
      %1522 = vst.msk [vmem:[#allocation2 + $0x88] sm:$0xff] %vm1504, %v1443
      %1523 = vst.msk [vmem:[#allocation2 + $0x90] sm:$0xff] %vm1504, %v1445
      %1524 = vst.msk [vmem:[#allocation2 + $0x98] sm:$0xff] %vm1504, %v1447
      %1525 = vst.msk [vmem:[#allocation2 + $0xa0] sm:$0xff] %vm1504, %v1449
      %1526 = vst.msk [vmem:[#allocation2 + $0xa8] sm:$0xff] %vm1504, %v1451
      %1527 = vst.msk [vmem:[#allocation2 + $0xb0] sm:$0xff] %vm1504, %v1453
      %1528 = vst.msk [vmem:[#allocation2 + $0xb8] sm:$0xff] %vm1504, %v1455
      %1529 = vst.msk [vmem:[#allocation2 + $0xc0] sm:$0xff] %vm1504, %v1457
      %1530 = vst.msk [vmem:[#allocation2 + $0xc8] sm:$0xff] %vm1504, %v1459
      %1531 = vst.msk [vmem:[#allocation2 + $0xd0] sm:$0xff] %vm1504, %v1461
      %1532 = vst.msk [vmem:[#allocation2 + $0xd8] sm:$0xff] %vm1504, %v1463
      %1533 = vst.msk [vmem:[#allocation2 + $0xe0] sm:$0xff] %vm1504, %v1465
      %1534 = vst.msk [vmem:[#allocation2 + $0xe8] sm:$0xff] %vm1504, %v1467
      %1535 = vst.msk [vmem:[#allocation2 + $0xf0] sm:$0xff] %vm1504, %v1469
      %1536 = vst.msk [vmem:[#allocation2 + $0xf8] sm:$0xff] %vm1504, %v1471
      %v1537 = vld [vmem:[#allocation2] sm:$0xff]
      %v1538 = vld [vmem:[#allocation2 + $0x8] sm:$0xff]
      %v1539 = vld [vmem:[#allocation2 + $0x10] sm:$0xff]
      %v1540 = vld [vmem:[#allocation2 + $0x18] sm:$0xff]
      %v1541 = vld [vmem:[#allocation2 + $0x20] sm:$0xff]
      %v1542 = vld [vmem:[#allocation2 + $0x28] sm:$0xff]
      %v1543 = vld [vmem:[#allocation2 + $0x30] sm:$0xff]
      %v1544 = vld [vmem:[#allocation2 + $0x38] sm:$0xff]
      %v1545 = vld [vmem:[#allocation2 + $0x40] sm:$0xff]
      %v1546 = vld [vmem:[#allocation2 + $0x48] sm:$0xff]
      %v1547 = vld [vmem:[#allocation2 + $0x50] sm:$0xff]
      %v1548 = vld [vmem:[#allocation2 + $0x58] sm:$0xff]
      %v1549 = vld [vmem:[#allocation2 + $0x60] sm:$0xff]
      %v1550 = vld [vmem:[#allocation2 + $0x68] sm:$0xff]
      %v1551 = vld [vmem:[#allocation2 + $0x70] sm:$0xff]
      %v1552 = vld [vmem:[#allocation2 + $0x78] sm:$0xff]
      %v1553 = vld [vmem:[#allocation2 + $0x80] sm:$0xff]
      %v1554 = vld [vmem:[#allocation2 + $0x88] sm:$0xff]
      %v1555 = vld [vmem:[#allocation2 + $0x90] sm:$0xff]
      %v1556 = vld [vmem:[#allocation2 + $0x98] sm:$0xff]
      %v1557 = vld [vmem:[#allocation2 + $0xa0] sm:$0xff]
      %v1558 = vld [vmem:[#allocation2 + $0xa8] sm:$0xff]
      %v1559 = vld [vmem:[#allocation2 + $0xb0] sm:$0xff]
      %v1560 = vld [vmem:[#allocation2 + $0xb8] sm:$0xff]
      %v1561 = vld [vmem:[#allocation2 + $0xc0] sm:$0xff]
      %v1562 = vld [vmem:[#allocation2 + $0xc8] sm:$0xff]
      %v1563 = vld [vmem:[#allocation2 + $0xd0] sm:$0xff]
      %v1564 = vld [vmem:[#allocation2 + $0xd8] sm:$0xff]
      %v1565 = vld [vmem:[#allocation2 + $0xe0] sm:$0xff]
      %v1566 = vld [vmem:[#allocation2 + $0xe8] sm:$0xff]
      %v1567 = vld [vmem:[#allocation2 + $0xf0] sm:$0xff]
      %v1568 = vld [vmem:[#allocation2 + $0xf8] sm:$0xff]
      %v1569 = vld [vmem:[%s1] sm:$0xff]
      %v1570 = vld [vmem:[%s1 + $0x8] sm:$0xff]
      %v1571 = vld [vmem:[%s1 + $0x10] sm:$0xff]
      %v1572 = vld [vmem:[%s1 + $0x18] sm:$0xff]
      %v1573 = vld [vmem:[%s1 + $0x20] sm:$0xf]
      %vm1574 = vcmask 293888
      %v1576 = vsel %vm1574, %v1537, 0
      %v1579 = vsel %vm1574, %v1538, 0
      %v1582 = vsel %vm1574, %v1539, 0
      %v1585 = vsel %vm1574, %v1540, 0
      %v1588 = vsel %vm1574, %v1541, 0
      %v1591 = vsel %vm1574, %v1542, 0
      %v1594 = vsel %vm1574, %v1543, 0
      %v1597 = vsel %vm1574, %v1544, 0
      %v1600 = vsel %vm1574, %v1545, 0
      %v1603 = vsel %vm1574, %v1546, 0
      %v1606 = vsel %vm1574, %v1547, 0
      %v1609 = vsel %vm1574, %v1548, 0
      %v1612 = vsel %vm1574, %v1549, 0
      %v1615 = vsel %vm1574, %v1550, 0
      %v1618 = vsel %vm1574, %v1551, 0
      %v1621 = vsel %vm1574, %v1552, 0
      %v1624 = vsel %vm1574, %v1553, 0
      %v1627 = vsel %vm1574, %v1554, 0
      %v1630 = vsel %vm1574, %v1555, 0
      %v1633 = vsel %vm1574, %v1556, 0
      %v1636 = vsel %vm1574, %v1557, 0
      %v1639 = vsel %vm1574, %v1558, 0
      %v1642 = vsel %vm1574, %v1559, 0
      %v1645 = vsel %vm1574, %v1560, 0
      %v1648 = vsel %vm1574, %v1561, 0
      %v1651 = vsel %vm1574, %v1562, 0
      %v1654 = vsel %vm1574, %v1563, 0
      %v1657 = vsel %vm1574, %v1564, 0
      %v1660 = vsel %vm1574, %v1565, 0
      %v1663 = vsel %vm1574, %v1566, 0
      %v1666 = vsel %vm1574, %v1567, 0
      %v1669 = vsel %vm1574, %v1568, 0
      %vm1671 = vcmask 1043456
      %v1673 = vsel %vm1671, %v1573, 0
      %1675 = vmatprep.subr.mxu0 0.0
      %1676 = vmatpush1.msra.mxu0 %v1569
      %1677 = vmatprep.subr.mxu0 0.0
      %1678 = vmatpush1.msra.mxu0 %v1570
      %1679 = vmatprep.subr.mxu0 0.0
      %1680 = vmatpush1.msra.mxu0 %v1571
      %1681 = vmatprep.subr.mxu0 0.0
      %1682 = vmatpush1.msra.mxu0 %v1572
      %1683 = vmatprep.subr.mxu0 0.0
      %1684 = vmatpush1.msra.mxu0 %v1673
      %1685 = vmatprep.subr.mxu0 0.0
      %1686 = vmatpush1.msra.mxu0 0.0
      %1687 = vmatprep.subr.mxu0 0.0
      %1688 = vmatpush1.msra.mxu0 0.0
      %1689 = vmatprep.subr.mxu0 0.0
      %1690 = vmatpush1.msra.mxu0 0.0
      %1691 = vmatprep.subr.mxu0 0.0
      %1692 = vmatpush1.msra.mxu0 0.0
      %1693 = vmatprep.subr.mxu0 0.0
      %1694 = vmatpush1.msra.mxu0 0.0
      %1695 = vmatprep.subr.mxu0 0.0
      %1696 = vmatpush1.msra.mxu0 0.0
      %1697 = vmatprep.subr.mxu0 0.0
      %1698 = vmatpush1.msra.mxu0 0.0
      %1699 = vmatprep.subr.mxu0 0.0
      %1700 = vmatpush1.msra.mxu0 0.0
      %1701 = vmatprep.subr.mxu0 0.0
      %1702 = vmatpush1.msra.mxu0 0.0
      %1703 = vmatprep.subr.mxu0 0.0
      %1704 = vmatpush1.msra.mxu0 0.0
      %1705 = vmatprep.subr.mxu0 0.0
      %1706 = vmatpush1.msra.mxu0 0.0
      %1707 = vmatprep.subr.mxu0 0.0
      %1708 = vmatpush1.msra.mxu0 0.0
      %1709 = vmatprep.subr.mxu0 0.0
      %1710 = vmatpush1.msra.mxu0 0.0
      %1711 = vmatprep.subr.mxu0 0.0
      %1712 = vmatpush1.msra.mxu0 0.0
      %1713 = vmatprep.subr.mxu0 0.0
      %1714 = vmatpush1.msra.mxu0 0.0
      %1715 = vmatprep.subr.mxu0 0.0
      %1716 = vmatpush1.msra.mxu0 0.0
      %1717 = vmatprep.subr.mxu0 0.0
      %1718 = vmatpush1.msra.mxu0 0.0
      %1719 = vmatprep.subr.mxu0 0.0
      %1720 = vmatpush1.msra.mxu0 0.0
      %1721 = vmatprep.subr.mxu0 0.0
      %1722 = vmatpush1.msra.mxu0 0.0
      %1723 = vmatprep.subr.mxu0 0.0
      %1724 = vmatpush1.msra.mxu0 0.0
      %1725 = vmatprep.subr.mxu0 0.0
      %1726 = vmatpush1.msra.mxu0 0.0
      %1727 = vmatprep.subr.mxu0 0.0
      %1728 = vmatpush1.msra.mxu0 0.0
      %1729 = vmatprep.subr.mxu0 0.0
      %1730 = vmatpush1.msra.mxu0 0.0
      %1731 = vmatprep.subr.mxu0 0.0
      %1732 = vmatpush1.msra.mxu0 0.0
      %1733 = vmatprep.subr.mxu0 0.0
      %1734 = vmatpush1.msra.mxu0 0.0
      %1735 = vmatprep.subr.mxu0 0.0
      %1736 = vmatpush1.msra.mxu0 0.0
      %1737 = vmatprep.subr.mxu0 0.0
      %1738 = vmatpush1.msra.mxu0 0.0
      %1739 = vmatprep.mubr.f32.mxu0 0.0
      %1740 = vmatmul.mubr.f32.gmra.mrb[0].mxu0 %v1576
      %v1741 = vpop.f32.mrb[0].mxu0
      %v1742 = vadd.f32 0.0, %v1741
      %v1743 = vpop.f32.mrb[0].mxu0
      %1744 = vmatprep.mubr.f32.mxu0 0.0
      %1745 = vmatmul.mubr.f32.gmra.mrb[0].mxu0 %v1579
      %v1746 = vpop.f32.mrb[0].mxu0
      %v1747 = vadd.f32 0.0, %v1746
      %v1748 = vpop.f32.mrb[0].mxu0
      %1749 = vmatprep.mubr.f32.mxu0 0.0
      %1750 = vmatmul.mubr.f32.gmra.mrb[0].mxu0 %v1582
      %v1751 = vpop.f32.mrb[0].mxu0
      %v1752 = vadd.f32 0.0, %v1751
      %v1753 = vpop.f32.mrb[0].mxu0
      %1754 = vmatprep.mubr.f32.mxu0 0.0
      %1755 = vmatmul.mubr.f32.gmra.mrb[0].mxu0 %v1585
      %v1756 = vpop.f32.mrb[0].mxu0
      %v1757 = vadd.f32 0.0, %v1756
      %v1758 = vpop.f32.mrb[0].mxu0
      %1759 = vmatprep.mubr.f32.mxu0 0.0
      %1760 = vmatmul.mubr.f32.gmra.mrb[0].mxu0 %v1588
      %v1761 = vpop.f32.mrb[0].mxu0
      %v1762 = vadd.f32 0.0, %v1761
      %v1763 = vpop.f32.mrb[0].mxu0
      %1764 = vmatprep.mubr.f32.mxu0 0.0
      %1765 = vmatmul.mubr.f32.gmra.mrb[0].mxu0 %v1591
      %v1766 = vpop.f32.mrb[0].mxu0
      %v1767 = vadd.f32 0.0, %v1766
      %v1768 = vpop.f32.mrb[0].mxu0
      %1769 = vmatprep.mubr.f32.mxu0 0.0
      %1770 = vmatmul.mubr.f32.gmra.mrb[0].mxu0 %v1594
      %v1771 = vpop.f32.mrb[0].mxu0
      %v1772 = vadd.f32 0.0, %v1771
      %v1773 = vpop.f32.mrb[0].mxu0
      %1774 = vmatprep.mubr.f32.mxu0 0.0
      %1775 = vmatmul.mubr.f32.gmra.mrb[0].mxu0 %v1597
      %v1776 = vpop.f32.mrb[0].mxu0
      %v1777 = vadd.f32 0.0, %v1776
      %v1778 = vpop.f32.mrb[0].mxu0
      %1779 = vmatprep.mubr.f32.mxu0 0.0
      %1780 = vmatmul.mubr.f32.gmra.mrb[0].mxu0 %v1600
      %v1781 = vpop.f32.mrb[0].mxu0
      %v1782 = vadd.f32 0.0, %v1781
      %v1783 = vpop.f32.mrb[0].mxu0
      %1784 = vmatprep.mubr.f32.mxu0 0.0
      %1785 = vmatmul.mubr.f32.gmra.mrb[0].mxu0 %v1603
      %v1786 = vpop.f32.mrb[0].mxu0
      %v1787 = vadd.f32 0.0, %v1786
      %v1788 = vpop.f32.mrb[0].mxu0
      %1789 = vmatprep.mubr.f32.mxu0 0.0
      %1790 = vmatmul.mubr.f32.gmra.mrb[0].mxu0 %v1606
      %v1791 = vpop.f32.mrb[0].mxu0
      %v1792 = vadd.f32 0.0, %v1791
      %v1793 = vpop.f32.mrb[0].mxu0
      %1794 = vmatprep.mubr.f32.mxu0 0.0
      %1795 = vmatmul.mubr.f32.gmra.mrb[0].mxu0 %v1609
      %v1796 = vpop.f32.mrb[0].mxu0
      %v1797 = vadd.f32 0.0, %v1796
      %v1798 = vpop.f32.mrb[0].mxu0
      %1799 = vmatprep.mubr.f32.mxu0 0.0
      %1800 = vmatmul.mubr.f32.gmra.mrb[0].mxu0 %v1612
      %v1801 = vpop.f32.mrb[0].mxu0
      %v1802 = vadd.f32 0.0, %v1801
      %v1803 = vpop.f32.mrb[0].mxu0
      %1804 = vmatprep.mubr.f32.mxu0 0.0
      %1805 = vmatmul.mubr.f32.gmra.mrb[0].mxu0 %v1615
      %v1806 = vpop.f32.mrb[0].mxu0
      %v1807 = vadd.f32 0.0, %v1806
      %v1808 = vpop.f32.mrb[0].mxu0
      %1809 = vmatprep.mubr.f32.mxu0 0.0
      %1810 = vmatmul.mubr.f32.gmra.mrb[0].mxu0 %v1618
      %v1811 = vpop.f32.mrb[0].mxu0
      %v1812 = vadd.f32 0.0, %v1811
      %v1813 = vpop.f32.mrb[0].mxu0
      %1814 = vmatprep.mubr.f32.mxu0 0.0
      %1815 = vmatmul.mubr.f32.gmra.mrb[0].mxu0 %v1621
      %v1816 = vpop.f32.mrb[0].mxu0
      %v1817 = vadd.f32 0.0, %v1816
      %v1818 = vpop.f32.mrb[0].mxu0
      %1819 = vmatprep.mubr.f32.mxu0 0.0
      %1820 = vmatmul.mubr.f32.gmra.mrb[0].mxu0 %v1624
      %v1821 = vpop.f32.mrb[0].mxu0
      %v1822 = vadd.f32 0.0, %v1821
      %v1823 = vpop.f32.mrb[0].mxu0
      %1824 = vmatprep.mubr.f32.mxu0 0.0
      %1825 = vmatmul.mubr.f32.gmra.mrb[0].mxu0 %v1627
      %v1826 = vpop.f32.mrb[0].mxu0
      %v1827 = vadd.f32 0.0, %v1826
      %v1828 = vpop.f32.mrb[0].mxu0
      %1829 = vmatprep.mubr.f32.mxu0 0.0
      %1830 = vmatmul.mubr.f32.gmra.mrb[0].mxu0 %v1630
      %v1831 = vpop.f32.mrb[0].mxu0
      %v1832 = vadd.f32 0.0, %v1831
      %v1833 = vpop.f32.mrb[0].mxu0
      %1834 = vmatprep.mubr.f32.mxu0 0.0
      %1835 = vmatmul.mubr.f32.gmra.mrb[0].mxu0 %v1633
      %v1836 = vpop.f32.mrb[0].mxu0
      %v1837 = vadd.f32 0.0, %v1836
      %v1838 = vpop.f32.mrb[0].mxu0
      %1839 = vmatprep.mubr.f32.mxu0 0.0
      %1840 = vmatmul.mubr.f32.gmra.mrb[0].mxu0 %v1636
      %v1841 = vpop.f32.mrb[0].mxu0
      %v1842 = vadd.f32 0.0, %v1841
      %v1843 = vpop.f32.mrb[0].mxu0
      %1844 = vmatprep.mubr.f32.mxu0 0.0
      %1845 = vmatmul.mubr.f32.gmra.mrb[0].mxu0 %v1639
      %v1846 = vpop.f32.mrb[0].mxu0
      %v1847 = vadd.f32 0.0, %v1846
      %v1848 = vpop.f32.mrb[0].mxu0
      %1849 = vmatprep.mubr.f32.mxu0 0.0
      %1850 = vmatmul.mubr.f32.gmra.mrb[0].mxu0 %v1642
      %v1851 = vpop.f32.mrb[0].mxu0
      %v1852 = vadd.f32 0.0, %v1851
      %v1853 = vpop.f32.mrb[0].mxu0
      %1854 = vmatprep.mubr.f32.mxu0 0.0
      %1855 = vmatmul.mubr.f32.gmra.mrb[0].mxu0 %v1645
      %v1856 = vpop.f32.mrb[0].mxu0
      %v1857 = vadd.f32 0.0, %v1856
      %v1858 = vpop.f32.mrb[0].mxu0
      %1859 = vmatprep.mubr.f32.mxu0 0.0
      %1860 = vmatmul.mubr.f32.gmra.mrb[0].mxu0 %v1648
      %v1861 = vpop.f32.mrb[0].mxu0
      %v1862 = vadd.f32 0.0, %v1861
      %v1863 = vpop.f32.mrb[0].mxu0
      %1864 = vmatprep.mubr.f32.mxu0 0.0
      %1865 = vmatmul.mubr.f32.gmra.mrb[0].mxu0 %v1651
      %v1866 = vpop.f32.mrb[0].mxu0
      %v1867 = vadd.f32 0.0, %v1866
      %v1868 = vpop.f32.mrb[0].mxu0
      %1869 = vmatprep.mubr.f32.mxu0 0.0
      %1870 = vmatmul.mubr.f32.gmra.mrb[0].mxu0 %v1654
      %v1871 = vpop.f32.mrb[0].mxu0
      %v1872 = vadd.f32 0.0, %v1871
      %v1873 = vpop.f32.mrb[0].mxu0
      %1874 = vmatprep.mubr.f32.mxu0 0.0
      %1875 = vmatmul.mubr.f32.gmra.mrb[0].mxu0 %v1657
      %v1876 = vpop.f32.mrb[0].mxu0
      %v1877 = vadd.f32 0.0, %v1876
      %v1878 = vpop.f32.mrb[0].mxu0
      %1879 = vmatprep.mubr.f32.mxu0 0.0
      %1880 = vmatmul.mubr.f32.gmra.mrb[0].mxu0 %v1660
      %v1881 = vpop.f32.mrb[0].mxu0
      %v1882 = vadd.f32 0.0, %v1881
      %v1883 = vpop.f32.mrb[0].mxu0
      %1884 = vmatprep.mubr.f32.mxu0 0.0
      %1885 = vmatmul.mubr.f32.gmra.mrb[0].mxu0 %v1663
      %v1886 = vpop.f32.mrb[0].mxu0
      %v1887 = vadd.f32 0.0, %v1886
      %v1888 = vpop.f32.mrb[0].mxu0
      %1889 = vmatprep.mubr.f32.mxu0 0.0
      %1890 = vmatmul.mubr.f32.gmra.mrb[0].mxu0 %v1666
      %v1891 = vpop.f32.mrb[0].mxu0
      %v1892 = vadd.f32 0.0, %v1891
      %v1893 = vpop.f32.mrb[0].mxu0
      %1894 = vmatprep.mubr.f32.mxu0 0.0
      %1895 = vmatmul.mubr.f32.gmra.mrb[0].mxu0 %v1669
      %v1896 = vpop.f32.mrb[0].mxu0
      %v1897 = vadd.f32 0.0, %v1896
      %v1898 = vpop.f32.mrb[0].mxu0
      %1899 = vdwg.mxu0
      %1900 = vst [vmem:[%s177] sm:$0xff] %v1742
      %1901 = vst [vmem:[%s177 + $0x8] sm:$0xff] %v1747
      %1902 = vst [vmem:[%s177 + $0x10] sm:$0xff] %v1752
      %1903 = vst [vmem:[%s177 + $0x18] sm:$0xff] %v1757
      %1904 = vst [vmem:[%s177 + $0x20] sm:$0xff] %v1762
      %1905 = vst [vmem:[%s177 + $0x28] sm:$0xff] %v1767
      %1906 = vst [vmem:[%s177 + $0x30] sm:$0xff] %v1772
      %1907 = vst [vmem:[%s177 + $0x38] sm:$0xff] %v1777
      %1908 = vst [vmem:[%s177 + $0x40] sm:$0xff] %v1782
      %1909 = vst [vmem:[%s177 + $0x48] sm:$0xff] %v1787
      %1910 = vst [vmem:[%s177 + $0x50] sm:$0xff] %v1792
      %1911 = vst [vmem:[%s177 + $0x58] sm:$0xff] %v1797
      %1912 = vst [vmem:[%s177 + $0x60] sm:$0xff] %v1802
      %1913 = vst [vmem:[%s177 + $0x68] sm:$0xff] %v1807
      %1914 = vst [vmem:[%s177 + $0x70] sm:$0xff] %v1812
      %1915 = vst [vmem:[%s177 + $0x78] sm:$0xff] %v1817
      %1916 = vst [vmem:[%s177 + $0x80] sm:$0xff] %v1822
      %1917 = vst [vmem:[%s177 + $0x88] sm:$0xff] %v1827
      %1918 = vst [vmem:[%s177 + $0x90] sm:$0xff] %v1832
      %1919 = vst [vmem:[%s177 + $0x98] sm:$0xff] %v1837
      %1920 = vst [vmem:[%s177 + $0xa0] sm:$0xff] %v1842
      %1921 = vst [vmem:[%s177 + $0xa8] sm:$0xff] %v1847
      %1922 = vst [vmem:[%s177 + $0xb0] sm:$0xff] %v1852
      %1923 = vst [vmem:[%s177 + $0xb8] sm:$0xff] %v1857
      %1924 = vst [vmem:[%s177 + $0xc0] sm:$0xff] %v1862
      %1925 = vst [vmem:[%s177 + $0xc8] sm:$0xff] %v1867
      %1926 = vst [vmem:[%s177 + $0xd0] sm:$0xff] %v1872
      %1927 = vst [vmem:[%s177 + $0xd8] sm:$0xff] %v1877
      %1928 = vst [vmem:[%s177 + $0xe0] sm:$0xff] %v1882
      %1929 = vst [vmem:[%s177 + $0xe8] sm:$0xff] %v1887
      %1930 = vst [vmem:[%s177 + $0xf0] sm:$0xff] %v1892
      %1931 = vst [vmem:[%s177 + $0xf8] sm:$0xff] %v1897
      %v1932 = vadd.f32 %v1742, %v1747
      %v1933 = vadd.f32 %v1932, %v1752
      %v1934 = vadd.f32 %v1933, %v1757
      %v1935 = vadd.f32 %v1934, %v1762
      %v1936 = vadd.f32 %v1935, %v1767
      %v1937 = vadd.f32 %v1936, %v1772
      %v1938 = vadd.f32 %v1937, %v1777
      %v1939 = vadd.f32 %v1938, %v1782
      %v1940 = vadd.f32 %v1939, %v1787
      %v1941 = vadd.f32 %v1940, %v1792
      %v1942 = vadd.f32 %v1941, %v1797
      %v1943 = vadd.f32 %v1942, %v1802
      %v1944 = vadd.f32 %v1943, %v1807
      %v1945 = vadd.f32 %v1944, %v1812
      %v1946 = vadd.f32 %v1945, %v1817
      %v1947 = vadd.f32 %v1946, %v1822
      %v1948 = vadd.f32 %v1947, %v1827
      %v1949 = vadd.f32 %v1948, %v1832
      %v1950 = vadd.f32 %v1949, %v1837
      %v1951 = vadd.f32 %v1950, %v1842
      %v1952 = vadd.f32 %v1951, %v1847
      %v1953 = vadd.f32 %v1952, %v1852
      %v1954 = vadd.f32 %v1953, %v1857
      %v1955 = vadd.f32 %v1954, %v1862
      %v1956 = vadd.f32 %v1955, %v1867
      %v1957 = vadd.f32 %v1956, %v1872
      %v1958 = vadd.f32 %v1957, %v1877
      %v1959 = vadd.f32 %v1958, %v1882
      %v1960 = vadd.f32 %v1959, %v1887
      %v1961 = vadd.f32 %v1960, %v1892
      %v1962 = vadd.f32 %v1961, %v1897
      %v1963 = vrot.slane %v1962, 4
      %v1964 = vadd.f32 %v1962, %v1963
      %v1965 = vrot.slane %v1964, 2
      %v1966 = vadd.f32 %v1964, %v1965
      %v1967 = vrot.slane %v1966, 1
      %v1968 = vadd.f32 %v1966, %v1967
      %v1969 = vmul.f32 %v1742, %v1742
      %v1970 = vmul.f32 %v1747, %v1747
      %v1971 = vmul.f32 %v1752, %v1752
      %v1972 = vmul.f32 %v1757, %v1757
      %v1973 = vmul.f32 %v1762, %v1762
      %v1974 = vmul.f32 %v1767, %v1767
      %v1975 = vmul.f32 %v1772, %v1772
      %v1976 = vmul.f32 %v1777, %v1777
      %v1977 = vmul.f32 %v1782, %v1782
      %v1978 = vmul.f32 %v1787, %v1787
      %v1979 = vmul.f32 %v1792, %v1792
      %v1980 = vmul.f32 %v1797, %v1797
      %v1981 = vmul.f32 %v1802, %v1802
      %v1982 = vmul.f32 %v1807, %v1807
      %v1983 = vmul.f32 %v1812, %v1812
      %v1984 = vmul.f32 %v1817, %v1817
      %v1985 = vmul.f32 %v1822, %v1822
      %v1986 = vmul.f32 %v1827, %v1827
      %v1987 = vmul.f32 %v1832, %v1832
      %v1988 = vmul.f32 %v1837, %v1837
      %v1989 = vmul.f32 %v1842, %v1842
      %v1990 = vmul.f32 %v1847, %v1847
      %v1991 = vmul.f32 %v1852, %v1852
      %v1992 = vmul.f32 %v1857, %v1857
      %v1993 = vmul.f32 %v1862, %v1862
      %v1994 = vmul.f32 %v1867, %v1867
      %v1995 = vmul.f32 %v1872, %v1872
      %v1996 = vmul.f32 %v1877, %v1877
      %v1997 = vmul.f32 %v1882, %v1882
      %v1998 = vmul.f32 %v1887, %v1887
      %v1999 = vmul.f32 %v1892, %v1892
      %v2000 = vmul.f32 %v1897, %v1897
      %v2001 = vadd.f32 %v1969, %v1970
      %v2002 = vadd.f32 %v2001, %v1971
      %v2003 = vadd.f32 %v2002, %v1972
      %v2004 = vadd.f32 %v2003, %v1973
      %v2005 = vadd.f32 %v2004, %v1974
      %v2006 = vadd.f32 %v2005, %v1975
      %v2007 = vadd.f32 %v2006, %v1976
      %v2008 = vadd.f32 %v2007, %v1977
      %v2009 = vadd.f32 %v2008, %v1978
      %v2010 = vadd.f32 %v2009, %v1979
      %v2011 = vadd.f32 %v2010, %v1980
      %v2012 = vadd.f32 %v2011, %v1981
      %v2013 = vadd.f32 %v2012, %v1982
      %v2014 = vadd.f32 %v2013, %v1983
      %v2015 = vadd.f32 %v2014, %v1984
      %v2016 = vadd.f32 %v2015, %v1985
      %v2017 = vadd.f32 %v2016, %v1986
      %v2018 = vadd.f32 %v2017, %v1987
      %v2019 = vadd.f32 %v2018, %v1988
      %v2020 = vadd.f32 %v2019, %v1989
      %v2021 = vadd.f32 %v2020, %v1990
      %v2022 = vadd.f32 %v2021, %v1991
      %v2023 = vadd.f32 %v2022, %v1992
      %v2024 = vadd.f32 %v2023, %v1993
      %v2025 = vadd.f32 %v2024, %v1994
      %v2026 = vadd.f32 %v2025, %v1995
      %v2027 = vadd.f32 %v2026, %v1996
      %v2028 = vadd.f32 %v2027, %v1997
      %v2029 = vadd.f32 %v2028, %v1998
      %v2030 = vadd.f32 %v2029, %v1999
      %v2031 = vadd.f32 %v2030, %v2000
      %v2032 = vrot.slane %v2031, 4
      %v2033 = vadd.f32 %v2031, %v2032
      %v2034 = vrot.slane %v2033, 2
      %v2035 = vadd.f32 %v2033, %v2034
      %v2036 = vrot.slane %v2035, 1
      %v2037 = vadd.f32 %v2035, %v2036
      %vm2038 = vcmask 1040384
      %v2039 = vsel %vm2038, %v1968, %v2037
      %2040 = vst [vmem:[%s181] sm:$0x3] %v2039
      %p2041 = scmp.lt.s32.totalorder %s15, 1
      %s2042 = scalar_select %p2041, %s15, 1
      %s2043 = smul.addr %s2042, 32
      %s2044 = smul.addr %s2043, 8
      %s2045 = scalar_lea.vmem %s2, %s2044
      %p2046 = scmp.lt.s32.totalorder %s15, 1
      %s2047 = scalar_select %p2046, %s15, 1
      %s2048 = smul.addr %s2047, 2
      %s2049 = scalar_lea.vmem %s3, %s2048
      // Predicated region
      $region29: #{masked_conv_layer.2} parent=27 // pred_check
        %p2050 = pneg %p80
      $region30: #{masked_conv_layer.2} parent=27 // pred_check_branch
        %2052 = sbr.rel (%p2050) target = $region32
      $region31: #{masked_conv_layer.2} parent=27 // pred_region
        _
      $region32: #{masked_conv_layer.2} parent=27 // pred_fallthru
        _
      // Predicated region
      $region33: #{masked_conv_layer.2} parent=27 // pred_check
        %p2053 = pneg %p106
      $region34: #{masked_conv_layer.2} parent=27 // pred_check_branch
        %2055 = sbr.rel (%p2053) target = $region36
      $region35: #{masked_conv_layer.2} parent=27 // pred_region
        _
      $region36: #{masked_conv_layer.2} parent=27 // pred_fallthru
        _
    $region28: #{masked_conv_layer.2} parent=5 // pred_fallthru
      _
    %p2056 = scmp.le.s32.totalorder 2, %s10
    // Predicated region
    $region37: #{masked_conv_layer.2} parent=5 // pred_check
      %p2057 = pneg %p2056
    $region38: #{masked_conv_layer.2} parent=5 // pred_check_branch
      %2059 = sbr.rel (%p2057) target = $region40
    $region39: #{masked_conv_layer.2} parent=5 // pred_region
      %s2060 = ssub.s32 %s10, 2
      // Predicated region
      $region41: #{masked_conv_layer.2} parent=39 // pred_check
        %p2061 = pneg %p86
      $region42: #{masked_conv_layer.2} parent=39 // pred_check_branch
        %2063 = sbr.rel (%p2061) target = $region44
      $region43: #{masked_conv_layer.2} parent=39 // pred_region
        %p2064 = scmp.lt.s32.totalorder %s16, 1
        %s2065 = scalar_select %p2064, %s16, 1
        %s2066 = smul.addr %s2065, 32
        %s2067 = smul.addr %s2066, 8
        %s2068 = scalar_lea.vmem %s2, %s2067
      $region44: #{masked_conv_layer.2} parent=39 // pred_fallthru
        _
      // Predicated region
      $region45: #{masked_conv_layer.2} parent=39 // pred_check
        %p2069 = pneg %p112
      $region46: #{masked_conv_layer.2} parent=39 // pred_check_branch
        %2071 = sbr.rel (%p2069) target = $region48
      $region47: #{masked_conv_layer.2} parent=39 // pred_region
        %p2072 = scmp.lt.s32.totalorder %s16, 1
        %s2073 = scalar_select %p2072, %s16, 1
        %s2074 = smul.addr %s2073, 2
        %s2075 = scalar_lea.vmem %s3, %s2074
      $region48: #{masked_conv_layer.2} parent=39 // pred_fallthru
        _
    $region40: #{masked_conv_layer.2} parent=5 // pred_fallthru
      _
  $region6: #{masked_conv_layer.2} parent=0 // loop_footer
    %s14 = sadd.s32 1, %s10
  $region7: #{masked_conv_layer.2} parent=0 // loop_footer_branch
    %9 = sbr.rel target = $region3
  $region8: #{masked_conv_layer.2} parent=0 // loop_exit
    _

</llo_original>
